<compile_context>
chip_gen: v5e
topology: v5e:2x2
jax: 0.10.0
libtpu: 0.0.40
codegen_flags: <defaults>
</compile_context>

<pallas_src>
import functools
import math

import jax
import jax.numpy as jnp
from jax import lax
from jax.experimental import pallas as pl
from jax.experimental.pallas import tpu as pltpu


# ------------------------------ Pallas kernel -------------------------------

def _layernorm(x, w, b, eps):
    mean = jnp.mean(x, axis=-1, keepdims=True)
    cent = x - mean
    var = jnp.mean(cent * cent, axis=-1, keepdims=True)
    inv = lax.rsqrt(var + eps)
    return cent * inv * w + b


def _transformer_block_kernel(
    x_ref, w_in_ref, b_in_ref, w_out_ref, b_out_ref,
    ln1_w_ref, ln1_b_ref, w_ff1_ref, b_ff1_ref, w_ff2_ref, b_ff2_ref,
    ln2_w_ref, ln2_b_ref, o_ref, *, num_heads, eps=1e-5):
    bf = jnp.bfloat16
    x3 = x_ref[...]                              # (N, L, E) f32
    N, L, E = x3.shape
    hd = E // num_heads
    scale = 1.0 / math.sqrt(hd)

    # Merge leading dims -> (N*L, E); pure reinterpretation, no lane movement.
    x = x3.reshape(N * L, E)
    x_bf = x.astype(bf)                          # cast activations exactly once

    # Fused QKV projection over all N*L rows in a single MXU GEMM.
    qkv = jnp.dot(x_bf, w_in_ref[...], preferred_element_type=jnp.float32)
    qkv = qkv + b_in_ref[...]                    # (N*L, 3E) f32

    # Split Q/K/V (128-lane aligned slices), cast once, regroup per batch.
    q = qkv[:, :E].astype(bf).reshape(N, L, E)
    k = qkv[:, E:2 * E].astype(bf).reshape(N, L, E)
    v = qkv[:, 2 * E:].astype(bf).reshape(N, L, E)

    # Per-head attention, batched over N; everything stays in registers.
    head_out = []
    for h in range(num_heads):
        sl = slice(h * hd, (h + 1) * hd)
        qh, kh, vh = q[..., sl], k[..., sl], v[..., sl]        # (N, L, hd) bf16
        # scores: 'bqd,bkd->bqk'
        s = lax.dot_general(qh, kh, (((2,), (2,)), ((0,), (0,))),
                            preferred_element_type=jnp.float32) * scale
        s = s - jnp.max(s, axis=-1, keepdims=True)
        p = jnp.exp(s)
        p = p / jnp.sum(p, axis=-1, keepdims=True)             # exact softmax
        # output: 'bqk,bkd->bqd'
        head_out.append(lax.dot_general(p.astype(bf), vh,
                                        (((2,), (1,)), ((0,), (0,))),
                                        preferred_element_type=jnp.float32))
    attn = jnp.concatenate(head_out, axis=-1).reshape(N * L, E)   # (N*L, E) f32

    # Output projection + residual + LayerNorm1.
    attn = jnp.dot(attn.astype(bf), w_out_ref[...],
                   preferred_element_type=jnp.float32) + b_out_ref[...]
    h1 = _layernorm(attn + x, ln1_w_ref[...], ln1_b_ref[...], eps)

    # Feed-forward: Linear(E, 2E) -> ReLU -> Linear(2E, E).
    ff = jnp.dot(h1.astype(bf), w_ff1_ref[...],
                 preferred_element_type=jnp.float32) + b_ff1_ref[...]
    ff = jnp.maximum(ff, 0.0)
    ff = jnp.dot(ff.astype(bf), w_ff2_ref[...],
                 preferred_element_type=jnp.float32) + b_ff2_ref[...]

    # Residual + LayerNorm2, lane-dense (E = 128) output block.
    out = _layernorm(ff + h1, ln2_w_ref[...], ln2_b_ref[...], eps)
    o_ref[...] = out.reshape(N, L, E).astype(o_ref.dtype)


# --------------------------------- wrappers ----------------------------------

def prepare_params(params):
    """One-time (outside jit) conversion of PyTorch-layout params to kernel layout."""
    bf, f32 = jnp.bfloat16, jnp.float32
    return {
        "w_in": jnp.asarray(params["in_proj_w"]).T.astype(bf),    # (E, 3E)
        "b_in": jnp.asarray(params["in_proj_b"], f32).reshape(1, -1),
        "w_out": jnp.asarray(params["out_proj_w"]).T.astype(bf),  # (E, E)
        "b_out": jnp.asarray(params["out_proj_b"], f32).reshape(1, -1),
        "ln1_w": jnp.asarray(params["ln1_w"], f32).reshape(1, -1),
        "ln1_b": jnp.asarray(params["ln1_b"], f32).reshape(1, -1),
        "w_ff1": jnp.asarray(params["ff1_w"]).T.astype(bf),       # (E, 2E)
        "b_ff1": jnp.asarray(params["ff1_b"], f32).reshape(1, -1),
        "w_ff2": jnp.asarray(params["ff2_w"]).T.astype(bf),       # (2E, E)
        "b_ff2": jnp.asarray(params["ff2_b"], f32).reshape(1, -1),
        "ln2_w": jnp.asarray(params["ln2_w"], f32).reshape(1, -1),
        "ln2_b": jnp.asarray(params["ln2_b"], f32).reshape(1, -1),
    }


def transformer_block_forward(x, prep, *, num_heads):
    """x: (L, N, E) seq-first (nn.MultiheadAttention default). Returns (L, N, E)."""
    L, N, E = x.shape
    assert E % num_heads == 0
    xb = jnp.transpose(x, (1, 0, 2))      # (N, L, E): each batch's rows contiguous

    vmem = pl.BlockSpec(memory_space=pltpu.MemorySpace.VMEM)
    out = pl.pallas_call(
        functools.partial(_transformer_block_kernel, num_heads=num_heads),
        out_shape=jax.ShapeDtypeStruct((N, L, E), jnp.float32),
        in_specs=[vmem] * 13,
        out_specs=vmem,
    )(xb, prep["w_in"], prep["b_in"], prep["w_out"], prep["b_out"],
      prep["ln1_w"], prep["ln1_b"], prep["w_ff1"], prep["b_ff1"],
      prep["w_ff2"], prep["b_ff2"], prep["ln2_w"], prep["ln2_b"])

    return jnp.transpose(out, (1, 0, 2))  # back to (L, N, E)


# --------------------------- params & pure-JAX ref ---------------------------

def init_params(key, emb_size):
    E = emb_size
    ks = jax.random.split(key, 8)

    def unif(k, shape, fan_in):
        bound = 1.0 / math.sqrt(fan_in)
        return jax.random.uniform(k, shape, jnp.float32, -bound, bound)

    return {
        "in_proj_w": unif(ks[0], (3 * E, E), E),
        "in_proj_b": unif(ks[1], (3 * E,), E),
        "out_proj_w": unif(ks[2], (E, E), E),
        "out_proj_b": unif(ks[3], (E,), E),
        "ln1_w": jnp.ones((E,), jnp.float32),
        "ln1_b": jnp.zeros((E,), jnp.float32),
        "ff1_w": unif(ks[4], (2 * E, E), E),
        "ff1_b": unif(ks[5], (2 * E,), E),
        "ff2_w": unif(ks[6], (E, 2 * E), 2 * E),
        "ff2_b": unif(ks[7], (E,), 2 * E),
        "ln2_w": jnp.ones((E,), jnp.float32),
        "ln2_b": jnp.zeros((E,), jnp.float32),
    }


def _ln_ref(x, w, b, eps=1e-5):
    mean = jnp.mean(x, axis=-1, keepdims=True)
    var = jnp.mean((x - mean) ** 2, axis=-1, keepdims=True)
    return (x - mean) / jnp.sqrt(var + eps) * w + b


def reference_forward(x, params, num_heads):
    """Pure-JAX f32 reference matching nn.MultiheadAttention + the block."""
    L, N, E = x.shape
    hd = E // num_heads
    w_in, b_in = params["in_proj_w"], params["in_proj_b"]
    q = x @ w_in[:E].T + b_in[:E]
    k = x @ w_in[E:2 * E].T + b_in[E:2 * E]
    v = x @ w_in[2 * E:].T + b_in[2 * E:]

    def split_heads(t):  # (L, N, E) -> (N*H, L, hd)
        return t.reshape(L, N * num_heads, hd).transpose(1, 0, 2)

    qh, kh, vh = split_heads(q), split_heads(k), split_heads(v)
    s = jnp.einsum("bld,bmd->blm", qh, kh) / math.sqrt(hd)
    p = jax.nn.softmax(s, axis=-1)
    o = jnp.einsum("blm,bmd->bld", p, vh)
    o = o.transpose(1, 0, 2).reshape(L, N, E)
    attn = o @ params["out_proj_w"].T + params["out_proj_b"]
    h1 = _ln_ref(attn + x, params["ln1_w"], params["ln1_b"])
    ff = jnp.maximum(h1 @ params["ff1_w"].T + params["ff1_b"], 0.0)
    ff = ff @ params["ff2_w"].T + params["ff2_b"]
    return _ln_ref(ff + h1, params["ln2_w"], params["ln2_b"])


# ----------------------------------- main ------------------------------------

if __name__ == "__main__":
    L, N, E, H = 16, 2, 128, 4     # seq, batch, emb_size, num_heads
    key = jax.random.PRNGKey(0)
    kx, kp = jax.random.split(key)
    x = jax.random.normal(kx, (L, N, E), jnp.float32)
    params = init_params(kp, E)

    # One-time weight layout conversion, outside the jitted call path.
    prep = prepare_params(params)
    jax.block_until_ready(prep)

    fwd = jax.jit(functools.partial(transformer_block_forward, num_heads=H))
    out = fwd(x, prep)
    jax.block_until_ready(out)

    assert out.shape == (L, N, E)
    assert bool(jnp.all(jnp.isfinite(out)))

    ref = reference_forward(x, params, H)
    err = float(jnp.max(jnp.abs(out - ref)))
    # bf16 MXU operands vs f32 reference: loose tolerance (intentional trade-off).
    assert err < 0.25, f"max abs error vs reference: {err}"

    print("KERNEL_OK")
</pallas_src>

<mosaic_0001>
module attributes {stable_mosaic.version = 11 : i64} {
  func.func @_transformer_block_kernel(%arg0: memref<2x16x128xf32, #tpu.memory_space<vmem>>, %arg1: memref<128x384xbf16, #tpu.memory_space<vmem>>, %arg2: memref<1x384xf32, #tpu.memory_space<vmem>>, %arg3: memref<128x128xbf16, #tpu.memory_space<vmem>>, %arg4: memref<1x128xf32, #tpu.memory_space<vmem>>, %arg5: memref<1x128xf32, #tpu.memory_space<vmem>>, %arg6: memref<1x128xf32, #tpu.memory_space<vmem>>, %arg7: memref<128x256xbf16, #tpu.memory_space<vmem>>, %arg8: memref<1x256xf32, #tpu.memory_space<vmem>>, %arg9: memref<256x128xbf16, #tpu.memory_space<vmem>>, %arg10: memref<1x128xf32, #tpu.memory_space<vmem>>, %arg11: memref<1x128xf32, #tpu.memory_space<vmem>>, %arg12: memref<1x128xf32, #tpu.memory_space<vmem>>, %arg13: memref<2x16x128xf32, #tpu.memory_space<vmem>>) attributes {dimension_semantics = [], scalar_prefetch = 0 : i64, scratch_operands = 0 : i64, tpu.core_type = #tpu.core_type<tc>} {
    %c0 = arith.constant 0 : index
    %c0_0 = arith.constant 0 : index
    %c0_1 = arith.constant 0 : index
    %0 = vector.load %arg0[%c0, %c0_0, %c0_1] : memref<2x16x128xf32, #tpu.memory_space<vmem>>, vector<2x16x128xf32>
    %1 = vector.shape_cast %0 : vector<2x16x128xf32> to vector<32x128xf32>
    %2 = arith.truncf %1 : vector<32x128xf32> to vector<32x128xbf16>
    %c0_2 = arith.constant 0 : index
    %c0_3 = arith.constant 0 : index
    %3 = vector.load %arg1[%c0_2, %c0_3] : memref<128x384xbf16, #tpu.memory_space<vmem>>, vector<128x384xbf16>
    %cst = arith.constant dense<0.000000e+00> : vector<32x384xf32>
    %4 = tpu.matmul %2, %3, %cst {dimension_numbers = #tpu.dot_dimension_numbers<[1], [0], [0], [1], [0, 0, 1, 1], [], []>} : vector<32x128xbf16>, vector<128x384xbf16>, vector<32x384xf32> -> vector<32x384xf32>
    %c0_4 = arith.constant 0 : index
    %c0_5 = arith.constant 0 : index
    %5 = vector.load %arg2[%c0_4, %c0_5] : memref<1x384xf32, #tpu.memory_space<vmem>>, vector<1x384xf32>
    %6 = vector.broadcast %5 : vector<1x384xf32> to vector<32x384xf32>
    %7 = arith.addf %4, %6 : vector<32x384xf32>
    %8 = vector.extract_strided_slice %7 {offsets = [0, 0], sizes = [32, 128], strides = [1, 1]} : vector<32x384xf32> to vector<32x128xf32>
    %9 = arith.truncf %8 : vector<32x128xf32> to vector<32x128xbf16>
    %10 = vector.shape_cast %9 : vector<32x128xbf16> to vector<2x16x128xbf16>
    %11 = vector.extract_strided_slice %7 {offsets = [0, 128], sizes = [32, 128], strides = [1, 1]} : vector<32x384xf32> to vector<32x128xf32>
    %12 = arith.truncf %11 : vector<32x128xf32> to vector<32x128xbf16>
    %13 = vector.shape_cast %12 : vector<32x128xbf16> to vector<2x16x128xbf16>
    %14 = vector.extract_strided_slice %7 {offsets = [0, 256], sizes = [32, 128], strides = [1, 1]} : vector<32x384xf32> to vector<32x128xf32>
    %15 = arith.truncf %14 : vector<32x128xf32> to vector<32x128xbf16>
    %16 = vector.shape_cast %15 : vector<32x128xbf16> to vector<2x16x128xbf16>
    %17 = vector.extract_strided_slice %10 {offsets = [0, 0, 0], sizes = [2, 16, 32], strides = [1, 1, 1]} : vector<2x16x128xbf16> to vector<2x16x32xbf16>
    %18 = vector.extract_strided_slice %13 {offsets = [0, 0, 0], sizes = [2, 16, 32], strides = [1, 1, 1]} : vector<2x16x128xbf16> to vector<2x16x32xbf16>
    %19 = vector.extract_strided_slice %16 {offsets = [0, 0, 0], sizes = [2, 16, 32], strides = [1, 1, 1]} : vector<2x16x128xbf16> to vector<2x16x32xbf16>
    %cst_6 = arith.constant dense<0.000000e+00> : vector<2x16x16xf32>
    %20 = tpu.matmul %17, %18, %cst_6 {dimension_numbers = #tpu.dot_dimension_numbers<[2], [2], [1], [1], [0, 0, 0, 1, 1, 1], [0], [0]>} : vector<2x16x32xbf16>, vector<2x16x32xbf16>, vector<2x16x16xf32> -> vector<2x16x16xf32>
    %cst_7 = arith.constant 0.176776692 : f32
    %21 = vector.broadcast %cst_7 : f32 to vector<2x16x16xf32>
    %22 = arith.mulf %20, %21 : vector<2x16x16xf32>
    %cst_8 = arith.constant dense<0xFF800000> : vector<2x16xf32>
    %23 = vector.multi_reduction <maximumf>, %22, %cst_8 [2] : vector<2x16x16xf32> to vector<2x16xf32>
    %24 = vector.shape_cast %23 : vector<2x16xf32> to vector<2x16x1xf32>
    %25 = vector.broadcast %24 : vector<2x16x1xf32> to vector<2x16x16xf32>
    %26 = arith.subf %22, %25 : vector<2x16x16xf32>
    %27 = math.exp %26 : vector<2x16x16xf32>
    %cst_9 = arith.constant dense<0.000000e+00> : vector<2x16xf32>
    %28 = vector.multi_reduction <add>, %27, %cst_9 [2] : vector<2x16x16xf32> to vector<2x16xf32>
    %29 = vector.shape_cast %28 : vector<2x16xf32> to vector<2x16x1xf32>
    %30 = vector.broadcast %29 : vector<2x16x1xf32> to vector<2x16x16xf32>
    %31 = arith.divf %27, %30 : vector<2x16x16xf32>
    %32 = arith.truncf %31 : vector<2x16x16xf32> to vector<2x16x16xbf16>
    %cst_10 = arith.constant dense<0.000000e+00> : vector<2x16x32xf32>
    %33 = tpu.matmul %32, %19, %cst_10 {dimension_numbers = #tpu.dot_dimension_numbers<[2], [1], [1], [2], [0, 0, 0, 1, 1, 2], [0], [0]>} : vector<2x16x16xbf16>, vector<2x16x32xbf16>, vector<2x16x32xf32> -> vector<2x16x32xf32>
    %34 = vector.extract_strided_slice %10 {offsets = [0, 0, 32], sizes = [2, 16, 32], strides = [1, 1, 1]} : vector<2x16x128xbf16> to vector<2x16x32xbf16>
    %35 = vector.extract_strided_slice %13 {offsets = [0, 0, 32], sizes = [2, 16, 32], strides = [1, 1, 1]} : vector<2x16x128xbf16> to vector<2x16x32xbf16>
    %36 = vector.extract_strided_slice %16 {offsets = [0, 0, 32], sizes = [2, 16, 32], strides = [1, 1, 1]} : vector<2x16x128xbf16> to vector<2x16x32xbf16>
    %cst_11 = arith.constant dense<0.000000e+00> : vector<2x16x16xf32>
    %37 = tpu.matmul %34, %35, %cst_11 {dimension_numbers = #tpu.dot_dimension_numbers<[2], [2], [1], [1], [0, 0, 0, 1, 1, 1], [0], [0]>} : vector<2x16x32xbf16>, vector<2x16x32xbf16>, vector<2x16x16xf32> -> vector<2x16x16xf32>
    %cst_12 = arith.constant 0.176776692 : f32
    %38 = vector.broadcast %cst_12 : f32 to vector<2x16x16xf32>
    %39 = arith.mulf %37, %38 : vector<2x16x16xf32>
    %cst_13 = arith.constant dense<0xFF800000> : vector<2x16xf32>
    %40 = vector.multi_reduction <maximumf>, %39, %cst_13 [2] : vector<2x16x16xf32> to vector<2x16xf32>
    %41 = vector.shape_cast %40 : vector<2x16xf32> to vector<2x16x1xf32>
    %42 = vector.broadcast %41 : vector<2x16x1xf32> to vector<2x16x16xf32>
    %43 = arith.subf %39, %42 : vector<2x16x16xf32>
    %44 = math.exp %43 : vector<2x16x16xf32>
    %cst_14 = arith.constant dense<0.000000e+00> : vector<2x16xf32>
    %45 = vector.multi_reduction <add>, %44, %cst_14 [2] : vector<2x16x16xf32> to vector<2x16xf32>
    %46 = vector.shape_cast %45 : vector<2x16xf32> to vector<2x16x1xf32>
    %47 = vector.broadcast %46 : vector<2x16x1xf32> to vector<2x16x16xf32>
    %48 = arith.divf %44, %47 : vector<2x16x16xf32>
    %49 = arith.truncf %48 : vector<2x16x16xf32> to vector<2x16x16xbf16>
    %cst_15 = arith.constant dense<0.000000e+00> : vector<2x16x32xf32>
    %50 = tpu.matmul %49, %36, %cst_15 {dimension_numbers = #tpu.dot_dimension_numbers<[2], [1], [1], [2], [0, 0, 0, 1, 1, 2], [0], [0]>} : vector<2x16x16xbf16>, vector<2x16x32xbf16>, vector<2x16x32xf32> -> vector<2x16x32xf32>
    %51 = vector.extract_strided_slice %10 {offsets = [0, 0, 64], sizes = [2, 16, 32], strides = [1, 1, 1]} : vector<2x16x128xbf16> to vector<2x16x32xbf16>
    %52 = vector.extract_strided_slice %13 {offsets = [0, 0, 64], sizes = [2, 16, 32], strides = [1, 1, 1]} : vector<2x16x128xbf16> to vector<2x16x32xbf16>
    %53 = vector.extract_strided_slice %16 {offsets = [0, 0, 64], sizes = [2, 16, 32], strides = [1, 1, 1]} : vector<2x16x128xbf16> to vector<2x16x32xbf16>
    %cst_16 = arith.constant dense<0.000000e+00> : vector<2x16x16xf32>
    %54 = tpu.matmul %51, %52, %cst_16 {dimension_numbers = #tpu.dot_dimension_numbers<[2], [2], [1], [1], [0, 0, 0, 1, 1, 1], [0], [0]>} : vector<2x16x32xbf16>, vector<2x16x32xbf16>, vector<2x16x16xf32> -> vector<2x16x16xf32>
    %cst_17 = arith.constant 0.176776692 : f32
    %55 = vector.broadcast %cst_17 : f32 to vector<2x16x16xf32>
    %56 = arith.mulf %54, %55 : vector<2x16x16xf32>
    %cst_18 = arith.constant dense<0xFF800000> : vector<2x16xf32>
    %57 = vector.multi_reduction <maximumf>, %56, %cst_18 [2] : vector<2x16x16xf32> to vector<2x16xf32>
    %58 = vector.shape_cast %57 : vector<2x16xf32> to vector<2x16x1xf32>
    %59 = vector.broadcast %58 : vector<2x16x1xf32> to vector<2x16x16xf32>
    %60 = arith.subf %56, %59 : vector<2x16x16xf32>
    %61 = math.exp %60 : vector<2x16x16xf32>
    %cst_19 = arith.constant dense<0.000000e+00> : vector<2x16xf32>
    %62 = vector.multi_reduction <add>, %61, %cst_19 [2] : vector<2x16x16xf32> to vector<2x16xf32>
    %63 = vector.shape_cast %62 : vector<2x16xf32> to vector<2x16x1xf32>
    %64 = vector.broadcast %63 : vector<2x16x1xf32> to vector<2x16x16xf32>
    %65 = arith.divf %61, %64 : vector<2x16x16xf32>
    %66 = arith.truncf %65 : vector<2x16x16xf32> to vector<2x16x16xbf16>
    %cst_20 = arith.constant dense<0.000000e+00> : vector<2x16x32xf32>
    %67 = tpu.matmul %66, %53, %cst_20 {dimension_numbers = #tpu.dot_dimension_numbers<[2], [1], [1], [2], [0, 0, 0, 1, 1, 2], [0], [0]>} : vector<2x16x16xbf16>, vector<2x16x32xbf16>, vector<2x16x32xf32> -> vector<2x16x32xf32>
    %68 = vector.extract_strided_slice %10 {offsets = [0, 0, 96], sizes = [2, 16, 32], strides = [1, 1, 1]} : vector<2x16x128xbf16> to vector<2x16x32xbf16>
    %69 = vector.extract_strided_slice %13 {offsets = [0, 0, 96], sizes = [2, 16, 32], strides = [1, 1, 1]} : vector<2x16x128xbf16> to vector<2x16x32xbf16>
    %70 = vector.extract_strided_slice %16 {offsets = [0, 0, 96], sizes = [2, 16, 32], strides = [1, 1, 1]} : vector<2x16x128xbf16> to vector<2x16x32xbf16>
    %cst_21 = arith.constant dense<0.000000e+00> : vector<2x16x16xf32>
    %71 = tpu.matmul %68, %69, %cst_21 {dimension_numbers = #tpu.dot_dimension_numbers<[2], [2], [1], [1], [0, 0, 0, 1, 1, 1], [0], [0]>} : vector<2x16x32xbf16>, vector<2x16x32xbf16>, vector<2x16x16xf32> -> vector<2x16x16xf32>
    %cst_22 = arith.constant 0.176776692 : f32
    %72 = vector.broadcast %cst_22 : f32 to vector<2x16x16xf32>
    %73 = arith.mulf %71, %72 : vector<2x16x16xf32>
    %cst_23 = arith.constant dense<0xFF800000> : vector<2x16xf32>
    %74 = vector.multi_reduction <maximumf>, %73, %cst_23 [2] : vector<2x16x16xf32> to vector<2x16xf32>
    %75 = vector.shape_cast %74 : vector<2x16xf32> to vector<2x16x1xf32>
    %76 = vector.broadcast %75 : vector<2x16x1xf32> to vector<2x16x16xf32>
    %77 = arith.subf %73, %76 : vector<2x16x16xf32>
    %78 = math.exp %77 : vector<2x16x16xf32>
    %cst_24 = arith.constant dense<0.000000e+00> : vector<2x16xf32>
    %79 = vector.multi_reduction <add>, %78, %cst_24 [2] : vector<2x16x16xf32> to vector<2x16xf32>
    %80 = vector.shape_cast %79 : vector<2x16xf32> to vector<2x16x1xf32>
    %81 = vector.broadcast %80 : vector<2x16x1xf32> to vector<2x16x16xf32>
    %82 = arith.divf %78, %81 : vector<2x16x16xf32>
    %83 = arith.truncf %82 : vector<2x16x16xf32> to vector<2x16x16xbf16>
    %cst_25 = arith.constant dense<0.000000e+00> : vector<2x16x32xf32>
    %84 = tpu.matmul %83, %70, %cst_25 {dimension_numbers = #tpu.dot_dimension_numbers<[2], [1], [1], [2], [0, 0, 0, 1, 1, 2], [0], [0]>} : vector<2x16x16xbf16>, vector<2x16x32xbf16>, vector<2x16x32xf32> -> vector<2x16x32xf32>
    %85 = tpu.concatenate %33, %50, %67, %84 in 2 : vector<2x16x32xf32>, vector<2x16x32xf32>, vector<2x16x32xf32>, vector<2x16x32xf32> -> vector<2x16x128xf32>
    %86 = vector.shape_cast %85 : vector<2x16x128xf32> to vector<32x128xf32>
    %87 = arith.truncf %86 : vector<32x128xf32> to vector<32x128xbf16>
    %c0_26 = arith.constant 0 : index
    %c0_27 = arith.constant 0 : index
    %88 = vector.load %arg3[%c0_26, %c0_27] : memref<128x128xbf16, #tpu.memory_space<vmem>>, vector<128x128xbf16>
    %cst_28 = arith.constant dense<0.000000e+00> : vector<32x128xf32>
    %89 = tpu.matmul %87, %88, %cst_28 {dimension_numbers = #tpu.dot_dimension_numbers<[1], [0], [0], [1], [0, 0, 1, 1], [], []>} : vector<32x128xbf16>, vector<128x128xbf16>, vector<32x128xf32> -> vector<32x128xf32>
    %c0_29 = arith.constant 0 : index
    %c0_30 = arith.constant 0 : index
    %90 = vector.load %arg4[%c0_29, %c0_30] : memref<1x128xf32, #tpu.memory_space<vmem>>, vector<1x128xf32>
    %91 = vector.broadcast %90 : vector<1x128xf32> to vector<32x128xf32>
    %92 = arith.addf %89, %91 : vector<32x128xf32>
    %93 = arith.addf %92, %1 : vector<32x128xf32>
    %c0_31 = arith.constant 0 : index
    %c0_32 = arith.constant 0 : index
    %94 = vector.load %arg5[%c0_31, %c0_32] : memref<1x128xf32, #tpu.memory_space<vmem>>, vector<1x128xf32>
    %c0_33 = arith.constant 0 : index
    %c0_34 = arith.constant 0 : index
    %95 = vector.load %arg6[%c0_33, %c0_34] : memref<1x128xf32, #tpu.memory_space<vmem>>, vector<1x128xf32>
    %cst_35 = arith.constant dense<0.000000e+00> : vector<32xf32>
    %96 = vector.multi_reduction <add>, %93, %cst_35 [1] : vector<32x128xf32> to vector<32xf32>
    %97 = vector.shape_cast %96 : vector<32xf32> to vector<32x1xf32>
    %cst_36 = arith.constant 1.280000e+02 : f32
    %98 = vector.broadcast %cst_36 : f32 to vector<32x1xf32>
    %99 = arith.divf %97, %98 : vector<32x1xf32>
    %100 = vector.broadcast %99 : vector<32x1xf32> to vector<32x128xf32>
    %101 = arith.subf %93, %100 : vector<32x128xf32>
    %102 = arith.mulf %101, %101 : vector<32x128xf32>
    %cst_37 = arith.constant dense<0.000000e+00> : vector<32xf32>
    %103 = vector.multi_reduction <add>, %102, %cst_37 [1] : vector<32x128xf32> to vector<32xf32>
    %104 = vector.shape_cast %103 : vector<32xf32> to vector<32x1xf32>
    %cst_38 = arith.constant 1.280000e+02 : f32
    %105 = vector.broadcast %cst_38 : f32 to vector<32x1xf32>
    %106 = arith.divf %104, %105 : vector<32x1xf32>
    %cst_39 = arith.constant 9.99999974E-6 : f32
    %107 = vector.broadcast %cst_39 : f32 to vector<32x1xf32>
    %108 = arith.addf %106, %107 : vector<32x1xf32>
    %109 = math.rsqrt %108 : vector<32x1xf32>
    %110 = vector.broadcast %109 : vector<32x1xf32> to vector<32x128xf32>
    %111 = arith.mulf %101, %110 : vector<32x128xf32>
    %112 = vector.broadcast %94 : vector<1x128xf32> to vector<32x128xf32>
    %113 = arith.mulf %111, %112 : vector<32x128xf32>
    %114 = vector.broadcast %95 : vector<1x128xf32> to vector<32x128xf32>
    %115 = arith.addf %113, %114 : vector<32x128xf32>
    %116 = arith.truncf %115 : vector<32x128xf32> to vector<32x128xbf16>
    %c0_40 = arith.constant 0 : index
    %c0_41 = arith.constant 0 : index
    %117 = vector.load %arg7[%c0_40, %c0_41] : memref<128x256xbf16, #tpu.memory_space<vmem>>, vector<128x256xbf16>
    %cst_42 = arith.constant dense<0.000000e+00> : vector<32x256xf32>
    %118 = tpu.matmul %116, %117, %cst_42 {dimension_numbers = #tpu.dot_dimension_numbers<[1], [0], [0], [1], [0, 0, 1, 1], [], []>} : vector<32x128xbf16>, vector<128x256xbf16>, vector<32x256xf32> -> vector<32x256xf32>
    %c0_43 = arith.constant 0 : index
    %c0_44 = arith.constant 0 : index
    %119 = vector.load %arg8[%c0_43, %c0_44] : memref<1x256xf32, #tpu.memory_space<vmem>>, vector<1x256xf32>
    %120 = vector.broadcast %119 : vector<1x256xf32> to vector<32x256xf32>
    %121 = arith.addf %118, %120 : vector<32x256xf32>
    %cst_45 = arith.constant 0.000000e+00 : f32
    %122 = vector.broadcast %cst_45 : f32 to vector<32x256xf32>
    %123 = arith.maximumf %121, %122 : vector<32x256xf32>
    %124 = arith.truncf %123 : vector<32x256xf32> to vector<32x256xbf16>
    %c0_46 = arith.constant 0 : index
    %c0_47 = arith.constant 0 : index
    %125 = vector.load %arg9[%c0_46, %c0_47] : memref<256x128xbf16, #tpu.memory_space<vmem>>, vector<256x128xbf16>
    %cst_48 = arith.constant dense<0.000000e+00> : vector<32x128xf32>
    %126 = tpu.matmul %124, %125, %cst_48 {dimension_numbers = #tpu.dot_dimension_numbers<[1], [0], [0], [1], [0, 0, 1, 1], [], []>} : vector<32x256xbf16>, vector<256x128xbf16>, vector<32x128xf32> -> vector<32x128xf32>
    %c0_49 = arith.constant 0 : index
    %c0_50 = arith.constant 0 : index
    %127 = vector.load %arg10[%c0_49, %c0_50] : memref<1x128xf32, #tpu.memory_space<vmem>>, vector<1x128xf32>
    %128 = vector.broadcast %127 : vector<1x128xf32> to vector<32x128xf32>
    %129 = arith.addf %126, %128 : vector<32x128xf32>
    %130 = arith.addf %129, %115 : vector<32x128xf32>
    %c0_51 = arith.constant 0 : index
    %c0_52 = arith.constant 0 : index
    %131 = vector.load %arg11[%c0_51, %c0_52] : memref<1x128xf32, #tpu.memory_space<vmem>>, vector<1x128xf32>
    %c0_53 = arith.constant 0 : index
    %c0_54 = arith.constant 0 : index
    %132 = vector.load %arg12[%c0_53, %c0_54] : memref<1x128xf32, #tpu.memory_space<vmem>>, vector<1x128xf32>
    %cst_55 = arith.constant dense<0.000000e+00> : vector<32xf32>
    %133 = vector.multi_reduction <add>, %130, %cst_55 [1] : vector<32x128xf32> to vector<32xf32>
    %134 = vector.shape_cast %133 : vector<32xf32> to vector<32x1xf32>
    %cst_56 = arith.constant 1.280000e+02 : f32
    %135 = vector.broadcast %cst_56 : f32 to vector<32x1xf32>
    %136 = arith.divf %134, %135 : vector<32x1xf32>
    %137 = vector.broadcast %136 : vector<32x1xf32> to vector<32x128xf32>
    %138 = arith.subf %130, %137 : vector<32x128xf32>
    %139 = arith.mulf %138, %138 : vector<32x128xf32>
    %cst_57 = arith.constant dense<0.000000e+00> : vector<32xf32>
    %140 = vector.multi_reduction <add>, %139, %cst_57 [1] : vector<32x128xf32> to vector<32xf32>
    %141 = vector.shape_cast %140 : vector<32xf32> to vector<32x1xf32>
    %cst_58 = arith.constant 1.280000e+02 : f32
    %142 = vector.broadcast %cst_58 : f32 to vector<32x1xf32>
    %143 = arith.divf %141, %142 : vector<32x1xf32>
    %cst_59 = arith.constant 9.99999974E-6 : f32
    %144 = vector.broadcast %cst_59 : f32 to vector<32x1xf32>
    %145 = arith.addf %143, %144 : vector<32x1xf32>
    %146 = math.rsqrt %145 : vector<32x1xf32>
    %147 = vector.broadcast %146 : vector<32x1xf32> to vector<32x128xf32>
    %148 = arith.mulf %138, %147 : vector<32x128xf32>
    %149 = vector.broadcast %131 : vector<1x128xf32> to vector<32x128xf32>
    %150 = arith.mulf %148, %149 : vector<32x128xf32>
    %151 = vector.broadcast %132 : vector<1x128xf32> to vector<32x128xf32>
    %152 = arith.addf %150, %151 : vector<32x128xf32>
    %153 = vector.shape_cast %152 : vector<32x128xf32> to vector<2x16x128xf32>
    %c0_60 = arith.constant 0 : index
    %c0_61 = arith.constant 0 : index
    %c0_62 = arith.constant 0 : index
    %154 = vector.load %arg13[%c0_60, %c0_61, %c0_62] : memref<2x16x128xf32, #tpu.memory_space<vmem>>, vector<2x16x128xf32>
    tpu.vector_store %arg13[%c0_60, %c0_61, %c0_62], %153 {strides = array<i32>} : memref<2x16x128xf32, #tpu.memory_space<vmem>>, vector<2x16x128xf32>,
    return
  }
}

</mosaic_0001>

<llo_original>
// kernel: transformer_block_forward.1
$region0: #{transformer_block_forward.1}
  #allocation0 [shape = 'u32[]', space=smem, size = 0x4, offset = 0x4, fixed_abs, tag = 'smem constant byte address 0x4 - core index']
  #allocation1 [shape = 'u32[72,128]{1,0:T(1,128)}', space=vmem, size = 0x9000, scoped, tag = 'internal scratch']
  %s0 = inlined_call_operand.vmem [shape: f32[2,16,128], index: 0, kind: input, shape index: {}]
  %s1 = inlined_call_operand.hbm [shape: bf16[128,384], index: 1, kind: input, shape index: {}]
  %s2 = inlined_call_operand.vmem [shape: f32[1,384], index: 2, kind: input, shape index: {}]
  %s3 = inlined_call_operand.vmem [shape: bf16[128,128], index: 3, kind: input, shape index: {}]
  %s4 = inlined_call_operand.vmem [shape: f32[1,128], index: 4, kind: input, shape index: {}]
  %s5 = inlined_call_operand.vmem [shape: f32[1,128], index: 5, kind: input, shape index: {}]
  %s6 = inlined_call_operand.vmem [shape: f32[1,128], index: 6, kind: input, shape index: {}]
  %s7 = inlined_call_operand.hbm [shape: bf16[128,256], index: 7, kind: input, shape index: {}]
  %s8 = inlined_call_operand.vmem [shape: f32[1,256], index: 8, kind: input, shape index: {}]
  %s9 = inlined_call_operand.hbm [shape: bf16[256,128], index: 9, kind: input, shape index: {}]
  %s10 = inlined_call_operand.vmem [shape: f32[1,128], index: 10, kind: input, shape index: {}]
  %s11 = inlined_call_operand.vmem [shape: f32[1,128], index: 11, kind: input, shape index: {}]
  %s12 = inlined_call_operand.vmem [shape: f32[1,128], index: 12, kind: input, shape index: {}]
  %s13 = inlined_call_operand.vmem [shape: f32[2,16,128], index: 13, kind: output, shape index: {}]
  %s14 = sld [smem:[#allocation0]]
  $region74: #{transformer_block_forward.1} parent=0
    _
  %s16 = ssub.s32 1, %s14
  %s17 = scalar_select 0, %s16, %s14
  $region1: #{transformer_block_forward.1} parent=0
    #allocation2 [shape = 'u8[98304]{0}', space=vmem, size = 0x18000, scoped, tag = 'input window, operand 1, single buffered']
    #allocation3 [shape = 's32[1]{0}', space=sflag, size = 0x4, scoped, tag = 'scoped memory for transformer_block_forward.1']
    #allocation4 [shape = 'u8[65536]{0}', space=vmem, size = 0x10000, scoped, tag = 'input window, operand 7, single buffered']
    #allocation5 [shape = 's32[1]{0}', space=sflag, size = 0x4, scoped, tag = 'scoped memory for transformer_block_forward.1']
    #allocation6 [shape = 'u8[65536]{0}', space=vmem, size = 0x10000, scoped, tag = 'input window, operand 9, single buffered']
    %18 = vsyncpa [#allocation3], 0
    %19 = vsyncpa [#allocation5], 0
    // Predicated region
    $region2: #{transformer_block_forward.1} parent=1 // pred_check
      _
    $region3: #{transformer_block_forward.1} parent=1 // pred_check_branch
      %21 = sbr.rel (0) target = $region5
    $region4: #{transformer_block_forward.1} parent=1 // pred_region
      _
    $region5: #{transformer_block_forward.1} parent=1 // pred_fallthru
      _
    // Predicated region
    $region6: #{transformer_block_forward.1} parent=1 // pred_check
      _
    $region7: #{transformer_block_forward.1} parent=1 // pred_check_branch
      %23 = sbr.rel (0) target = $region9
    $region8: #{transformer_block_forward.1} parent=1 // pred_region
      %25 = vsyncadd [#allocation3], 0
      %s26 = sshll.u32 %s1, 4
      %s27 = int_to_ptr.hbm [resolvable:$true] %s26
      %s28 = sshll.u32 [#allocation2], 4
      %s29 = int_to_ptr.vmem [resolvable:$true] %s28
      %34 = dma.hbm_to_vmem [thread:$0]  %s27, 3072, %s29, [#allocation3], 192, 192, 12
    $region9: #{transformer_block_forward.1} parent=1 // pred_fallthru
      _
    // Predicated region
    $region10: #{transformer_block_forward.1} parent=1 // pred_check
      _
    $region11: #{transformer_block_forward.1} parent=1 // pred_check_branch
      %36 = sbr.rel (0) target = $region13
    $region12: #{transformer_block_forward.1} parent=1 // pred_region
      _
    $region13: #{transformer_block_forward.1} parent=1 // pred_fallthru
      _
    // Predicated region
    $region14: #{transformer_block_forward.1} parent=1 // pred_check
      _
    $region15: #{transformer_block_forward.1} parent=1 // pred_check_branch
      %38 = sbr.rel (0) target = $region17
    $region16: #{transformer_block_forward.1} parent=1 // pred_region
      _
    $region17: #{transformer_block_forward.1} parent=1 // pred_fallthru
      _
    // Predicated region
    $region18: #{transformer_block_forward.1} parent=1 // pred_check
      _
    $region19: #{transformer_block_forward.1} parent=1 // pred_check_branch
      %40 = sbr.rel (0) target = $region21
    $region20: #{transformer_block_forward.1} parent=1 // pred_region
      _
    $region21: #{transformer_block_forward.1} parent=1 // pred_fallthru
      _
    // Predicated region
    $region22: #{transformer_block_forward.1} parent=1 // pred_check
      _
    $region23: #{transformer_block_forward.1} parent=1 // pred_check_branch
      %42 = sbr.rel (0) target = $region25
    $region24: #{transformer_block_forward.1} parent=1 // pred_region
      _
    $region25: #{transformer_block_forward.1} parent=1 // pred_fallthru
      _
    // Predicated region
    $region26: #{transformer_block_forward.1} parent=1 // pred_check
      _
    $region27: #{transformer_block_forward.1} parent=1 // pred_check_branch
      %44 = sbr.rel (0) target = $region29
    $region28: #{transformer_block_forward.1} parent=1 // pred_region
      _
    $region29: #{transformer_block_forward.1} parent=1 // pred_fallthru
      _
    // Predicated region
    $region30: #{transformer_block_forward.1} parent=1 // pred_check
      _
    $region31: #{transformer_block_forward.1} parent=1 // pred_check_branch
      %46 = sbr.rel (0) target = $region33
    $region32: #{transformer_block_forward.1} parent=1 // pred_region
      %48 = vsyncadd [#allocation5], 0
      %s49 = sshll.u32 %s7, 4
      %s50 = int_to_ptr.hbm [resolvable:$true] %s49
      %s51 = sshll.u32 [#allocation4], 4
      %s52 = int_to_ptr.vmem [resolvable:$true] %s51
      %57 = dma.hbm_to_vmem [thread:$0]  %s50, 2048, %s52, [#allocation5], 128, 128, 8
    $region33: #{transformer_block_forward.1} parent=1 // pred_fallthru
      _
    // Predicated region
    $region34: #{transformer_block_forward.1} parent=1 // pred_check
      _
    $region35: #{transformer_block_forward.1} parent=1 // pred_check_branch
      %59 = sbr.rel (0) target = $region37
    $region36: #{transformer_block_forward.1} parent=1 // pred_region
      _
    $region37: #{transformer_block_forward.1} parent=1 // pred_fallthru
      _
    // Predicated region
    $region38: #{transformer_block_forward.1} parent=1 // pred_check
      _
    $region39: #{transformer_block_forward.1} parent=1 // pred_check_branch
      %61 = sbr.rel (0) target = $region41
    $region40: #{transformer_block_forward.1} parent=1 // pred_region
      %63 = vsyncadd [#allocation5], 0
      %s64 = sshll.u32 %s9, 4
      %s65 = int_to_ptr.hbm [resolvable:$true] %s64
      %s66 = sshll.u32 [#allocation6], 4
      %s67 = int_to_ptr.vmem [resolvable:$true] %s66
      %72 = dma.hbm_to_vmem [thread:$0]  %s65, 2048, %s67, [#allocation5], 64, 64, 4
    $region41: #{transformer_block_forward.1} parent=1 // pred_fallthru
      _
    // Predicated region
    $region42: #{transformer_block_forward.1} parent=1 // pred_check
      _
    $region43: #{transformer_block_forward.1} parent=1 // pred_check_branch
      %74 = sbr.rel (0) target = $region45
    $region44: #{transformer_block_forward.1} parent=1 // pred_region
      _
    $region45: #{transformer_block_forward.1} parent=1 // pred_fallthru
      _
    // Predicated region
    $region46: #{transformer_block_forward.1} parent=1 // pred_check
      _
    $region47: #{transformer_block_forward.1} parent=1 // pred_check_branch
      %76 = sbr.rel (0) target = $region49
    $region48: #{transformer_block_forward.1} parent=1 // pred_region
      _
    $region49: #{transformer_block_forward.1} parent=1 // pred_fallthru
      _
    // Predicated region
    $region50: #{transformer_block_forward.1} parent=1 // pred_check
      _
    $region51: #{transformer_block_forward.1} parent=1 // pred_check_branch
      %78 = sbr.rel (0) target = $region53
    $region52: #{transformer_block_forward.1} parent=1 // pred_region
      _
    $region53: #{transformer_block_forward.1} parent=1 // pred_fallthru
      _
    // Predicated region
    $region54: #{transformer_block_forward.1} parent=1 // pred_check
      _
    $region55: #{transformer_block_forward.1} parent=1 // pred_check_branch
      %80 = sbr.rel (0) target = $region57
    $region56: #{transformer_block_forward.1} parent=1 // pred_region
      %82 = dma.done [#allocation3], 3072
    $region57: #{transformer_block_forward.1} parent=1 // pred_fallthru
      _
    // Predicated region
    $region58: #{transformer_block_forward.1} parent=1 // pred_check
      _
    $region59: #{transformer_block_forward.1} parent=1 // pred_check_branch
      %84 = sbr.rel (0) target = $region61
    $region60: #{transformer_block_forward.1} parent=1 // pred_region
      %86 = dma.done [#allocation5], 2048
    $region61: #{transformer_block_forward.1} parent=1 // pred_fallthru
      _
    // Predicated region
    $region62: #{transformer_block_forward.1} parent=1 // pred_check
      _
    $region63: #{transformer_block_forward.1} parent=1 // pred_check_branch
      %88 = sbr.rel (0) target = $region65
    $region64: #{transformer_block_forward.1} parent=1 // pred_region
      %90 = dma.done [#allocation5], 2048
    $region65: #{transformer_block_forward.1} parent=1 // pred_fallthru
      _
    %v92 = vld [vmem:[%s0] sm:$0xff]
    %v93 = vld [vmem:[%s0 + $0x8] sm:$0xff]
    %v94 = vld [vmem:[%s0 + $0x10] sm:$0xff]
    %v95 = vld [vmem:[%s0 + $0x18] sm:$0xff]
    %v96 = vpack.c.bf16 %v93, %v92
    %v97 = vpack.c.bf16 %v95, %v94
    %v98 = vld [vmem:[#allocation2] sm:$0xff]
    %v99 = vld [vmem:[#allocation2 + $0x8] sm:$0xf]
    %v100 = vld [vmem:[#allocation2 + $0xc] sm:$0xff]
    %v101 = vld [vmem:[#allocation2 + $0x14] sm:$0xf]
    %v102 = vld [vmem:[#allocation2 + $0x18] sm:$0xff]
    %v103 = vld [vmem:[#allocation2 + $0x20] sm:$0xf]
    %v104 = vld [vmem:[#allocation2 + $0x24] sm:$0xff]
    %v105 = vld [vmem:[#allocation2 + $0x2c] sm:$0xf]
    %v106 = vld [vmem:[#allocation2 + $0x30] sm:$0xff]
    %v107 = vld [vmem:[#allocation2 + $0x38] sm:$0xf]
    %v108 = vld [vmem:[#allocation2 + $0x3c] sm:$0xff]
    %v109 = vld [vmem:[#allocation2 + $0x44] sm:$0xf]
    %v110 = vld [vmem:[#allocation2 + $0x48] sm:$0xff]
    %v111 = vld [vmem:[#allocation2 + $0x50] sm:$0xf]
    %v112 = vld [vmem:[#allocation2 + $0x54] sm:$0xff]
    %v113 = vld [vmem:[#allocation2 + $0x5c] sm:$0xf]
    %v114 = vld [vmem:[#allocation2 + $0x60] sm:$0xff]
    %v115 = vld [vmem:[#allocation2 + $0x68] sm:$0xf]
    %v116 = vld [vmem:[#allocation2 + $0x6c] sm:$0xff]
    %v117 = vld [vmem:[#allocation2 + $0x74] sm:$0xf]
    %v118 = vld [vmem:[#allocation2 + $0x78] sm:$0xff]
    %v119 = vld [vmem:[#allocation2 + $0x80] sm:$0xf]
    %v120 = vld [vmem:[#allocation2 + $0x84] sm:$0xff]
    %v121 = vld [vmem:[#allocation2 + $0x8c] sm:$0xf]
    %v122 = vld [vmem:[#allocation2 + $0x90] sm:$0xff]
    %v123 = vld [vmem:[#allocation2 + $0x98] sm:$0xf]
    %v124 = vld [vmem:[#allocation2 + $0x9c] sm:$0xff]
    %v125 = vld [vmem:[#allocation2 + $0xa4] sm:$0xf]
    %v126 = vld [vmem:[#allocation2 + $0xa8] sm:$0xff]
    %v127 = vld [vmem:[#allocation2 + $0xb0] sm:$0xf]
    %v128 = vld [vmem:[#allocation2 + $0xb4] sm:$0xff]
    %v129 = vld [vmem:[#allocation2 + $0xbc] sm:$0xf]
    %v130 = vld [vmem:[%s2] sm:$0x7]
    %v132 = vperm.slane %v130, 0
    %v133 = vperm.slane %v130, 1
    %v134 = vperm.slane %v130, 2
    %v170 = vunpack.c.l.b16 %v98
    %v171 = vunpack.c.h.b16 %v98
    %v172 = vunpack.c.l.b16 %v99
    %v173 = vunpack.c.l.b16 %v100
    %v174 = vunpack.c.h.b16 %v100
    %v175 = vunpack.c.l.b16 %v101
    %v176 = vunpack.c.l.b16 %v102
    %v177 = vunpack.c.h.b16 %v102
    %v178 = vunpack.c.l.b16 %v103
    %v179 = vunpack.c.l.b16 %v104
    %v180 = vunpack.c.h.b16 %v104
    %v181 = vunpack.c.l.b16 %v105
    %v182 = vunpack.c.l.b16 %v106
    %v183 = vunpack.c.h.b16 %v106
    %v184 = vunpack.c.l.b16 %v107
    %v185 = vunpack.c.l.b16 %v108
    %v186 = vunpack.c.h.b16 %v108
    %v187 = vunpack.c.l.b16 %v109
    %v188 = vunpack.c.l.b16 %v110
    %v189 = vunpack.c.h.b16 %v110
    %v190 = vunpack.c.l.b16 %v111
    %v191 = vunpack.c.l.b16 %v112
    %v192 = vunpack.c.h.b16 %v112
    %v193 = vunpack.c.l.b16 %v113
    %v194 = vunpack.c.l.b16 %v114
    %v195 = vunpack.c.h.b16 %v114
    %v196 = vunpack.c.l.b16 %v115
    %v197 = vunpack.c.l.b16 %v116
    %v198 = vunpack.c.h.b16 %v116
    %v199 = vunpack.c.l.b16 %v117
    %v200 = vunpack.c.l.b16 %v118
    %v201 = vunpack.c.h.b16 %v118
    %v202 = vunpack.c.l.b16 %v119
    %v203 = vunpack.c.l.b16 %v120
    %v204 = vunpack.c.h.b16 %v120
    %v205 = vunpack.c.l.b16 %v121
    %v206 = vunpack.c.l.b16 %v122
    %v207 = vunpack.c.h.b16 %v122
    %v208 = vunpack.c.l.b16 %v123
    %v209 = vunpack.c.l.b16 %v124
    %v210 = vunpack.c.h.b16 %v124
    %v211 = vunpack.c.l.b16 %v125
    %v212 = vunpack.c.l.b16 %v126
    %v213 = vunpack.c.h.b16 %v126
    %v214 = vunpack.c.l.b16 %v127
    %v215 = vunpack.c.l.b16 %v128
    %v216 = vunpack.c.h.b16 %v128
    %v217 = vunpack.c.l.b16 %v129
    %v218 = vpack.c.b16 %v173, %v170
    %v219 = vpack.c.b16 %v174, %v171
    %v220 = vpack.c.b16 %v175, %v172
    %v221 = vpack.c.b16 %v179, %v176
    %v222 = vpack.c.b16 %v180, %v177
    %v223 = vpack.c.b16 %v181, %v178
    %v224 = vpack.c.b16 %v185, %v182
    %v225 = vpack.c.b16 %v186, %v183
    %v226 = vpack.c.b16 %v187, %v184
    %v227 = vpack.c.b16 %v191, %v188
    %v228 = vpack.c.b16 %v192, %v189
    %v229 = vpack.c.b16 %v193, %v190
    %v230 = vpack.c.b16 %v197, %v194
    %v231 = vpack.c.b16 %v198, %v195
    %v232 = vpack.c.b16 %v199, %v196
    %v233 = vpack.c.b16 %v203, %v200
    %v234 = vpack.c.b16 %v204, %v201
    %v235 = vpack.c.b16 %v205, %v202
    %v236 = vpack.c.b16 %v209, %v206
    %v237 = vpack.c.b16 %v210, %v207
    %v238 = vpack.c.b16 %v211, %v208
    %v239 = vpack.c.b16 %v215, %v212
    %v240 = vpack.c.b16 %v216, %v213
    %v241 = vpack.c.b16 %v217, %v214
    %266 = vmatpush.bf16.msra.mxu0 %v239
    %267 = vmatpush.bf16.msra.mxu0 %v236
    %268 = vmatpush.bf16.msra.mxu0 %v233
    %269 = vmatpush.bf16.msra.mxu0 %v230
    %270 = vmatpush.bf16.msra.mxu0 %v227
    %271 = vmatpush.bf16.msra.mxu0 %v224
    %272 = vmatpush.bf16.msra.mxu0 %v221
    %273 = vmatpush.bf16.msra.mxu0 %v218
    %274 = vmatmul.bf16.gmra.mxu0 %v96
    %v275 = vpop.f32.mrf.mxu0
    %v276 = vadd.f32 %v132, %v275
    %v277 = vpop.f32.mrf.mxu0
    %v278 = vadd.f32 %v132, %v277
    %279 = vmatmul.bf16.gmra.mxu0 %v97
    %v280 = vpop.f32.mrf.mxu0
    %v281 = vadd.f32 %v132, %v280
    %v282 = vpop.f32.mrf.mxu0
    %v283 = vadd.f32 %v132, %v282
    %284 = vdwg.mxu0
    %285 = vmatpush.bf16.msra.mxu0 %v240
    %286 = vmatpush.bf16.msra.mxu0 %v237
    %287 = vmatpush.bf16.msra.mxu0 %v234
    %288 = vmatpush.bf16.msra.mxu0 %v231
    %289 = vmatpush.bf16.msra.mxu0 %v228
    %290 = vmatpush.bf16.msra.mxu0 %v225
    %291 = vmatpush.bf16.msra.mxu0 %v222
    %292 = vmatpush.bf16.msra.mxu0 %v219
    %293 = vmatmul.bf16.gmra.mxu0 %v96
    %v294 = vpop.f32.mrf.mxu0
    %v295 = vadd.f32 %v133, %v294
    %v296 = vpop.f32.mrf.mxu0
    %v297 = vadd.f32 %v133, %v296
    %298 = vmatmul.bf16.gmra.mxu0 %v97
    %v299 = vpop.f32.mrf.mxu0
    %v300 = vadd.f32 %v133, %v299
    %v301 = vpop.f32.mrf.mxu0
    %v302 = vadd.f32 %v133, %v301
    %303 = vdwg.mxu0
    %304 = vmatpush.bf16.msra.mxu0 %v241
    %305 = vmatpush.bf16.msra.mxu0 %v238
    %306 = vmatpush.bf16.msra.mxu0 %v235
    %307 = vmatpush.bf16.msra.mxu0 %v232
    %308 = vmatpush.bf16.msra.mxu0 %v229
    %309 = vmatpush.bf16.msra.mxu0 %v226
    %310 = vmatpush.bf16.msra.mxu0 %v223
    %311 = vmatpush.bf16.msra.mxu0 %v220
    %312 = vmatmul.bf16.gmra.mxu0 %v96
    %v313 = vpop.f32.mrf.mxu0
    %v314 = vadd.f32 %v134, %v313
    %v315 = vpop.f32.mrf.mxu0
    %v316 = vadd.f32 %v134, %v315
    %317 = vmatmul.bf16.gmra.mxu0 %v97
    %v318 = vpop.f32.mrf.mxu0
    %v319 = vadd.f32 %v134, %v318
    %v320 = vpop.f32.mrf.mxu0
    %v321 = vadd.f32 %v134, %v320
    %322 = vdwg.mxu0
    %v323 = vpack.c.bf16 %v276, %v276
    %v324 = vpack.c.bf16 %v278, %v278
    %v325 = vpack.c.bf16 %v281, %v281
    %v326 = vpack.c.bf16 %v283, %v283
    %v327 = vpack.c.bf16 %v295, %v295
    %v328 = vpack.c.bf16 %v297, %v297
    %v329 = vpack.c.bf16 %v300, %v300
    %v330 = vpack.c.bf16 %v302, %v302
    %v331 = vpack.c.bf16 %v314, %v314
    %v332 = vpack.c.bf16 %v316, %v316
    %v333 = vpack.c.bf16 %v319, %v319
    %v334 = vpack.c.bf16 %v321, %v321
    %v337 = vunpack.c.l.b16 %v323
    %v338 = vunpack.c.l.b16 %v324
    %v339 = vpack.c.b16 %v338, %v337
    %v342 = vunpack.c.l.b16 %v327
    %v343 = vunpack.c.l.b16 %v328
    %v344 = vpack.c.b16 %v343, %v342
    %vm345 = vcmask 261120
    %v347 = vsel %vm345, %v339, 0
    %v350 = vsel %vm345, %v344, 0
    %352 = vmatpush.bf16.xpose.msra.mxu0 0
    %353 = vmatpush.bf16.xpose.msra.mxu0 0
    %354 = vmatpush.bf16.xpose.msra.mxu0 0
    %355 = vmatpush.bf16.xpose.msra.mxu0 0
    %356 = vmatpush.bf16.xpose.msra.mxu0 0
    %357 = vmatpush.bf16.xpose.msra.mxu0 0
    %358 = vmatpush.bf16.xpose.msra.mxu0 0
    %359 = vmatpush.bf16.xpose.msra.mxu0 %v350
    %360 = vmatmul.bf16.gmra.mxu0 %v347
    %v361 = vpop.f32.mrf.mxu0
    %v362 = vadd.f32 0.0, %v361
    %v363 = vpop.f32.mrf.mxu0
    %v364 = vadd.f32 0.0, %v363
    %365 = vdwg.mxu0
    %v368 = vunpack.c.l.b16 %v325
    %v369 = vunpack.c.l.b16 %v326
    %v370 = vpack.c.b16 %v369, %v368
    %v373 = vunpack.c.l.b16 %v329
    %v374 = vunpack.c.l.b16 %v330
    %v375 = vpack.c.b16 %v374, %v373
    %v377 = vsel %vm345, %v370, 0
    %v380 = vsel %vm345, %v375, 0
    %382 = vmatpush.bf16.xpose.msra.mxu0 0
    %383 = vmatpush.bf16.xpose.msra.mxu0 0
    %384 = vmatpush.bf16.xpose.msra.mxu0 0
    %385 = vmatpush.bf16.xpose.msra.mxu0 0
    %386 = vmatpush.bf16.xpose.msra.mxu0 0
    %387 = vmatpush.bf16.xpose.msra.mxu0 0
    %388 = vmatpush.bf16.xpose.msra.mxu0 0
    %389 = vmatpush.bf16.xpose.msra.mxu0 %v380
    %390 = vmatmul.bf16.gmra.mxu0 %v377
    %v391 = vpop.f32.mrf.mxu0
    %v392 = vadd.f32 0.0, %v391
    %v393 = vpop.f32.mrf.mxu0
    %v394 = vadd.f32 0.0, %v393
    %395 = vdwg.mxu0
    %v396 = vmul.f32 %v362, 0.17677669
    %v397 = vmul.f32 %v364, 0.17677669
    %v398 = vmul.f32 %v392, 0.17677669
    %v399 = vmul.f32 %v394, 0.17677669
    %vm400 = vcmask 130048
    %v401 = vsel %vm400, %v396, -inf
    %402 = vmax.xlane.f32.xlu0 %v401
    %v403 = vpop.xlane.xlu0 %402
    %v404 = vsel %vm400, %v397, -inf
    %405 = vmax.xlane.f32.xlu0 %v404
    %v406 = vpop.xlane.xlu0 %405
    %v407 = vsel %vm400, %v398, -inf
    %408 = vmax.xlane.f32.xlu0 %v407
    %v409 = vpop.xlane.xlu0 %408
    %v410 = vsel %vm400, %v399, -inf
    %411 = vmax.xlane.f32.xlu0 %v410
    %v412 = vpop.xlane.xlu0 %411
    %v413 = vsub.f32 %v396, %v403
    %v414 = vsub.f32 %v397, %v406
    %v415 = vsub.f32 %v398, %v409
    %v416 = vsub.f32 %v399, %v412
    %v417 = vmul.f32 %v413, 1.442695
    %v418 = vpow.pop %v417
    %v419 = vmul.f32 %v414, 1.442695
    %v420 = vpow.pop %v419
    %v421 = vmul.f32 %v415, 1.442695
    %v422 = vpow.pop %v421
    %v423 = vmul.f32 %v416, 1.442695
    %v424 = vpow.pop %v423
    %v425 = vsel %vm400, %v418, 0.0
    %426 = vadd.xlane.f32.xlu0 %v425
    %v427 = vpop.xlane.xlu0 %426
    %v428 = vsel %vm400, %v420, 0.0
    %429 = vadd.xlane.f32.xlu0 %v428
    %v430 = vpop.xlane.xlu0 %429
    %v431 = vsel %vm400, %v422, 0.0
    %432 = vadd.xlane.f32.xlu0 %v431
    %v433 = vpop.xlane.xlu0 %432
    %v434 = vsel %vm400, %v424, 0.0
    %435 = vadd.xlane.f32.xlu0 %v434
    %v436 = vpop.xlane.xlu0 %435
    %v437 = vrcp.pop %v427
    %v438 = vmul.f32 %v427, %v437
    %v439 = vsub.f32 1.0, %v438
    %v440 = vmul.f32 %v437, %v439
    %v441 = vadd.f32 %v437, %v440
    %vm442 = vweird.f32 %v427
    %vm443 = vweird.f32 %v437
    %vm444 = vmor %vm442, %vm443
    %v445 = vsel %vm444, %v437, %v441
    %v446 = vand.u32 2147483647, %v427
    %vm447 = vcmp.eq.f32.partialorder %v446, 8.507059e+37
    %v448 = vand.u32 %v427, 2147483648
    %v449 = vor.u32 1.1754944e-38, %v448
    %v450 = vsel %vm447, %v449, %v445
    %v451 = vmul.f32 %v418, %v450
    %v452 = vrcp.pop %v430
    %v453 = vmul.f32 %v430, %v452
    %v454 = vsub.f32 1.0, %v453
    %v455 = vmul.f32 %v452, %v454
    %v456 = vadd.f32 %v452, %v455
    %vm457 = vweird.f32 %v430
    %vm458 = vweird.f32 %v452
    %vm459 = vmor %vm457, %vm458
    %v460 = vsel %vm459, %v452, %v456
    %v461 = vand.u32 2147483647, %v430
    %vm462 = vcmp.eq.f32.partialorder %v461, 8.507059e+37
    %v463 = vand.u32 %v430, 2147483648
    %v464 = vor.u32 1.1754944e-38, %v463
    %v465 = vsel %vm462, %v464, %v460
    %v466 = vmul.f32 %v420, %v465
    %v467 = vrcp.pop %v433
    %v468 = vmul.f32 %v433, %v467
    %v469 = vsub.f32 1.0, %v468
    %v470 = vmul.f32 %v467, %v469
    %v471 = vadd.f32 %v467, %v470
    %vm472 = vweird.f32 %v433
    %vm473 = vweird.f32 %v467
    %vm474 = vmor %vm472, %vm473
    %v475 = vsel %vm474, %v467, %v471
    %v476 = vand.u32 2147483647, %v433
    %vm477 = vcmp.eq.f32.partialorder %v476, 8.507059e+37
    %v478 = vand.u32 %v433, 2147483648
    %v479 = vor.u32 1.1754944e-38, %v478
    %v480 = vsel %vm477, %v479, %v475
    %v481 = vmul.f32 %v422, %v480
    %v482 = vrcp.pop %v436
    %v483 = vmul.f32 %v436, %v482
    %v484 = vsub.f32 1.0, %v483
    %v485 = vmul.f32 %v482, %v484
    %v486 = vadd.f32 %v482, %v485
    %vm487 = vweird.f32 %v436
    %vm488 = vweird.f32 %v482
    %vm489 = vmor %vm487, %vm488
    %v490 = vsel %vm489, %v482, %v486
    %v491 = vand.u32 2147483647, %v436
    %vm492 = vcmp.eq.f32.partialorder %v491, 8.507059e+37
    %v493 = vand.u32 %v436, 2147483648
    %v494 = vor.u32 1.1754944e-38, %v493
    %v495 = vsel %vm492, %v494, %v490
    %v496 = vmul.f32 %v424, %v495
    %v497 = vpack.c.bf16 %v451, %v451
    %v498 = vpack.c.bf16 %v466, %v466
    %v499 = vpack.c.bf16 %v481, %v481
    %v500 = vpack.c.bf16 %v496, %v496
    %v503 = vunpack.c.l.b16 %v497
    %v504 = vunpack.c.l.b16 %v498
    %v505 = vpack.c.b16 %v504, %v503
    %v508 = vunpack.c.l.b16 %v331
    %v509 = vunpack.c.l.b16 %v332
    %v510 = vpack.c.b16 %v509, %v508
    %v513 = vsel %vm400, %v505, 0
    %515 = vmatpush.bf16.msra.mxu0 0
    %516 = vmatpush.bf16.msra.mxu0 0
    %517 = vmatpush.bf16.msra.mxu0 0
    %518 = vmatpush.bf16.msra.mxu0 0
    %519 = vmatpush.bf16.msra.mxu0 0
    %520 = vmatpush.bf16.msra.mxu0 0
    %521 = vmatpush.bf16.msra.mxu0 0
    %522 = vmatpush.bf16.msra.mxu0 %v510
    %523 = vmatmul.bf16.gmra.mxu0 %v513
    %v524 = vpop.f32.mrf.mxu0
    %v525 = vadd.f32 0.0, %v524
    %v526 = vpop.f32.mrf.mxu0
    %v527 = vadd.f32 0.0, %v526
    %528 = vdwg.mxu0
    %v531 = vunpack.c.l.b16 %v499
    %v532 = vunpack.c.l.b16 %v500
    %v533 = vpack.c.b16 %v532, %v531
    %v536 = vunpack.c.l.b16 %v333
    %v537 = vunpack.c.l.b16 %v334
    %v538 = vpack.c.b16 %v537, %v536
    %v541 = vsel %vm400, %v533, 0
    %543 = vmatpush.bf16.msra.mxu0 0
    %544 = vmatpush.bf16.msra.mxu0 0
    %545 = vmatpush.bf16.msra.mxu0 0
    %546 = vmatpush.bf16.msra.mxu0 0
    %547 = vmatpush.bf16.msra.mxu0 0
    %548 = vmatpush.bf16.msra.mxu0 0
    %549 = vmatpush.bf16.msra.mxu0 0
    %550 = vmatpush.bf16.msra.mxu0 %v538
    %551 = vmatmul.bf16.gmra.mxu0 %v541
    %v552 = vpop.f32.mrf.mxu0
    %v553 = vadd.f32 0.0, %v552
    %v554 = vpop.f32.mrf.mxu0
    %v555 = vadd.f32 0.0, %v554
    %556 = vdwg.mxu0
    %557 = vrot.lane.b32.xlu0 %v339, 96
    %v558 = vpop.permute.xlu0 %557
    %559 = vrot.lane.b32.xlu0 %v344, 96
    %v560 = vpop.permute.xlu0 %559
    %v562 = vsel %vm345, %v558, 0
    %v565 = vsel %vm345, %v560, 0
    %567 = vmatpush.bf16.xpose.msra.mxu0 0
    %568 = vmatpush.bf16.xpose.msra.mxu0 0
    %569 = vmatpush.bf16.xpose.msra.mxu0 0
    %570 = vmatpush.bf16.xpose.msra.mxu0 0
    %571 = vmatpush.bf16.xpose.msra.mxu0 0
    %572 = vmatpush.bf16.xpose.msra.mxu0 0
    %573 = vmatpush.bf16.xpose.msra.mxu0 0
    %574 = vmatpush.bf16.xpose.msra.mxu0 %v565
    %575 = vmatmul.bf16.gmra.mxu0 %v562
    %v576 = vpop.f32.mrf.mxu0
    %v577 = vadd.f32 0.0, %v576
    %v578 = vpop.f32.mrf.mxu0
    %v579 = vadd.f32 0.0, %v578
    %580 = vdwg.mxu0
    %581 = vrot.lane.b32.xlu0 %v370, 96
    %v582 = vpop.permute.xlu0 %581
    %583 = vrot.lane.b32.xlu0 %v375, 96
    %v584 = vpop.permute.xlu0 %583
    %v586 = vsel %vm345, %v582, 0
    %v589 = vsel %vm345, %v584, 0
    %591 = vmatpush.bf16.xpose.msra.mxu0 0
    %592 = vmatpush.bf16.xpose.msra.mxu0 0
    %593 = vmatpush.bf16.xpose.msra.mxu0 0
    %594 = vmatpush.bf16.xpose.msra.mxu0 0
    %595 = vmatpush.bf16.xpose.msra.mxu0 0
    %596 = vmatpush.bf16.xpose.msra.mxu0 0
    %597 = vmatpush.bf16.xpose.msra.mxu0 0
    %598 = vmatpush.bf16.xpose.msra.mxu0 %v589
    %599 = vmatmul.bf16.gmra.mxu0 %v586
    %v600 = vpop.f32.mrf.mxu0
    %v601 = vadd.f32 0.0, %v600
    %v602 = vpop.f32.mrf.mxu0
    %v603 = vadd.f32 0.0, %v602
    %604 = vdwg.mxu0
    %v605 = vmul.f32 %v577, 0.17677669
    %v606 = vmul.f32 %v579, 0.17677669
    %v607 = vmul.f32 %v601, 0.17677669
    %v608 = vmul.f32 %v603, 0.17677669
    %v609 = vsel %vm400, %v605, -inf
    %610 = vmax.xlane.f32.xlu0 %v609
    %v611 = vpop.xlane.xlu0 %610
    %v612 = vsel %vm400, %v606, -inf
    %613 = vmax.xlane.f32.xlu0 %v612
    %v614 = vpop.xlane.xlu0 %613
    %v615 = vsel %vm400, %v607, -inf
    %616 = vmax.xlane.f32.xlu0 %v615
    %v617 = vpop.xlane.xlu0 %616
    %v618 = vsel %vm400, %v608, -inf
    %619 = vmax.xlane.f32.xlu0 %v618
    %v620 = vpop.xlane.xlu0 %619
    %v621 = vsub.f32 %v605, %v611
    %v622 = vsub.f32 %v606, %v614
    %v623 = vsub.f32 %v607, %v617
    %v624 = vsub.f32 %v608, %v620
    %v625 = vmul.f32 %v621, 1.442695
    %v626 = vpow.pop %v625
    %v627 = vmul.f32 %v622, 1.442695
    %v628 = vpow.pop %v627
    %v629 = vmul.f32 %v623, 1.442695
    %v630 = vpow.pop %v629
    %v631 = vmul.f32 %v624, 1.442695
    %v632 = vpow.pop %v631
    %v633 = vsel %vm400, %v626, 0.0
    %634 = vadd.xlane.f32.xlu0 %v633
    %v635 = vpop.xlane.xlu0 %634
    %v636 = vsel %vm400, %v628, 0.0
    %637 = vadd.xlane.f32.xlu0 %v636
    %v638 = vpop.xlane.xlu0 %637
    %v639 = vsel %vm400, %v630, 0.0
    %640 = vadd.xlane.f32.xlu0 %v639
    %v641 = vpop.xlane.xlu0 %640
    %v642 = vsel %vm400, %v632, 0.0
    %643 = vadd.xlane.f32.xlu0 %v642
    %v644 = vpop.xlane.xlu0 %643
    %v645 = vrcp.pop %v635
    %v646 = vmul.f32 %v635, %v645
    %v647 = vsub.f32 1.0, %v646
    %v648 = vmul.f32 %v645, %v647
    %v649 = vadd.f32 %v645, %v648
    %vm650 = vweird.f32 %v635
    %vm651 = vweird.f32 %v645
    %vm652 = vmor %vm650, %vm651
    %v653 = vsel %vm652, %v645, %v649
    %v654 = vand.u32 2147483647, %v635
    %vm655 = vcmp.eq.f32.partialorder %v654, 8.507059e+37
    %v656 = vand.u32 %v635, 2147483648
    %v657 = vor.u32 1.1754944e-38, %v656
    %v658 = vsel %vm655, %v657, %v653
    %v659 = vmul.f32 %v626, %v658
    %v660 = vrcp.pop %v638
    %v661 = vmul.f32 %v638, %v660
    %v662 = vsub.f32 1.0, %v661
    %v663 = vmul.f32 %v660, %v662
    %v664 = vadd.f32 %v660, %v663
    %vm665 = vweird.f32 %v638
    %vm666 = vweird.f32 %v660
    %vm667 = vmor %vm665, %vm666
    %v668 = vsel %vm667, %v660, %v664
    %v669 = vand.u32 2147483647, %v638
    %vm670 = vcmp.eq.f32.partialorder %v669, 8.507059e+37
    %v671 = vand.u32 %v638, 2147483648
    %v672 = vor.u32 1.1754944e-38, %v671
    %v673 = vsel %vm670, %v672, %v668
    %v674 = vmul.f32 %v628, %v673
    %v675 = vrcp.pop %v641
    %v676 = vmul.f32 %v641, %v675
    %v677 = vsub.f32 1.0, %v676
    %v678 = vmul.f32 %v675, %v677
    %v679 = vadd.f32 %v675, %v678
    %vm680 = vweird.f32 %v641
    %vm681 = vweird.f32 %v675
    %vm682 = vmor %vm680, %vm681
    %v683 = vsel %vm682, %v675, %v679
    %v684 = vand.u32 2147483647, %v641
    %vm685 = vcmp.eq.f32.partialorder %v684, 8.507059e+37
    %v686 = vand.u32 %v641, 2147483648
    %v687 = vor.u32 1.1754944e-38, %v686
    %v688 = vsel %vm685, %v687, %v683
    %v689 = vmul.f32 %v630, %v688
    %v690 = vrcp.pop %v644
    %v691 = vmul.f32 %v644, %v690
    %v692 = vsub.f32 1.0, %v691
    %v693 = vmul.f32 %v690, %v692
    %v694 = vadd.f32 %v690, %v693
    %vm695 = vweird.f32 %v644
    %vm696 = vweird.f32 %v690
    %vm697 = vmor %vm695, %vm696
    %v698 = vsel %vm697, %v690, %v694
    %v699 = vand.u32 2147483647, %v644
    %vm700 = vcmp.eq.f32.partialorder %v699, 8.507059e+37
    %v701 = vand.u32 %v644, 2147483648
    %v702 = vor.u32 1.1754944e-38, %v701
    %v703 = vsel %vm700, %v702, %v698
    %v704 = vmul.f32 %v632, %v703
    %v705 = vpack.c.bf16 %v659, %v659
    %v706 = vpack.c.bf16 %v674, %v674
    %v707 = vpack.c.bf16 %v689, %v689
    %v708 = vpack.c.bf16 %v704, %v704
    %v711 = vunpack.c.l.b16 %v705
    %v712 = vunpack.c.l.b16 %v706
    %v713 = vpack.c.b16 %v712, %v711
    %714 = vrot.lane.b32.xlu0 %v510, 96
    %v715 = vpop.permute.xlu0 %714
    %v718 = vsel %vm400, %v713, 0
    %720 = vmatpush.bf16.msra.mxu0 0
    %721 = vmatpush.bf16.msra.mxu0 0
    %722 = vmatpush.bf16.msra.mxu0 0
    %723 = vmatpush.bf16.msra.mxu0 0
    %724 = vmatpush.bf16.msra.mxu0 0
    %725 = vmatpush.bf16.msra.mxu0 0
    %726 = vmatpush.bf16.msra.mxu0 0
    %727 = vmatpush.bf16.msra.mxu0 %v715
    %728 = vmatmul.bf16.gmra.mxu0 %v718
    %v729 = vpop.f32.mrf.mxu0
    %v730 = vadd.f32 0.0, %v729
    %v731 = vpop.f32.mrf.mxu0
    %v732 = vadd.f32 0.0, %v731
    %733 = vdwg.mxu0
    %v736 = vunpack.c.l.b16 %v707
    %v737 = vunpack.c.l.b16 %v708
    %v738 = vpack.c.b16 %v737, %v736
    %739 = vrot.lane.b32.xlu0 %v538, 96
    %v740 = vpop.permute.xlu0 %739
    %v743 = vsel %vm400, %v738, 0
    %745 = vmatpush.bf16.msra.mxu0 0
    %746 = vmatpush.bf16.msra.mxu0 0
    %747 = vmatpush.bf16.msra.mxu0 0
    %748 = vmatpush.bf16.msra.mxu0 0
    %749 = vmatpush.bf16.msra.mxu0 0
    %750 = vmatpush.bf16.msra.mxu0 0
    %751 = vmatpush.bf16.msra.mxu0 0
    %752 = vmatpush.bf16.msra.mxu0 %v740
    %753 = vmatmul.bf16.gmra.mxu0 %v743
    %v754 = vpop.f32.mrf.mxu0
    %v755 = vadd.f32 0.0, %v754
    %v756 = vpop.f32.mrf.mxu0
    %v757 = vadd.f32 0.0, %v756
    %758 = vdwg.mxu0
    %759 = vrot.lane.b32.xlu0 %v339, 64
    %v760 = vpop.permute.xlu0 %759
    %761 = vrot.lane.b32.xlu0 %v344, 64
    %v762 = vpop.permute.xlu0 %761
    %v764 = vsel %vm345, %v760, 0
    %v767 = vsel %vm345, %v762, 0
    %769 = vmatpush.bf16.xpose.msra.mxu0 0
    %770 = vmatpush.bf16.xpose.msra.mxu0 0
    %771 = vmatpush.bf16.xpose.msra.mxu0 0
    %772 = vmatpush.bf16.xpose.msra.mxu0 0
    %773 = vmatpush.bf16.xpose.msra.mxu0 0
    %774 = vmatpush.bf16.xpose.msra.mxu0 0
    %775 = vmatpush.bf16.xpose.msra.mxu0 0
    %776 = vmatpush.bf16.xpose.msra.mxu0 %v767
    %777 = vmatmul.bf16.gmra.mxu0 %v764
    %v778 = vpop.f32.mrf.mxu0
    %v779 = vadd.f32 0.0, %v778
    %v780 = vpop.f32.mrf.mxu0
    %v781 = vadd.f32 0.0, %v780
    %782 = vdwg.mxu0
    %783 = vrot.lane.b32.xlu0 %v370, 64
    %v784 = vpop.permute.xlu0 %783
    %785 = vrot.lane.b32.xlu0 %v375, 64
    %v786 = vpop.permute.xlu0 %785
    %v788 = vsel %vm345, %v784, 0
    %v791 = vsel %vm345, %v786, 0
    %793 = vmatpush.bf16.xpose.msra.mxu0 0
    %794 = vmatpush.bf16.xpose.msra.mxu0 0
    %795 = vmatpush.bf16.xpose.msra.mxu0 0
    %796 = vmatpush.bf16.xpose.msra.mxu0 0
    %797 = vmatpush.bf16.xpose.msra.mxu0 0
    %798 = vmatpush.bf16.xpose.msra.mxu0 0
    %799 = vmatpush.bf16.xpose.msra.mxu0 0
    %800 = vmatpush.bf16.xpose.msra.mxu0 %v791
    %801 = vmatmul.bf16.gmra.mxu0 %v788
    %v802 = vpop.f32.mrf.mxu0
    %v803 = vadd.f32 0.0, %v802
    %v804 = vpop.f32.mrf.mxu0
    %v805 = vadd.f32 0.0, %v804
    %806 = vdwg.mxu0
    %v807 = vmul.f32 %v779, 0.17677669
    %v808 = vmul.f32 %v781, 0.17677669
    %v809 = vmul.f32 %v803, 0.17677669
    %v810 = vmul.f32 %v805, 0.17677669
    %v811 = vsel %vm400, %v807, -inf
    %812 = vmax.xlane.f32.xlu0 %v811
    %v813 = vpop.xlane.xlu0 %812
    %v814 = vsel %vm400, %v808, -inf
    %815 = vmax.xlane.f32.xlu0 %v814
    %v816 = vpop.xlane.xlu0 %815
    %v817 = vsel %vm400, %v809, -inf
    %818 = vmax.xlane.f32.xlu0 %v817
    %v819 = vpop.xlane.xlu0 %818
    %v820 = vsel %vm400, %v810, -inf
    %821 = vmax.xlane.f32.xlu0 %v820
    %v822 = vpop.xlane.xlu0 %821
    %v823 = vsub.f32 %v807, %v813
    %v824 = vsub.f32 %v808, %v816
    %v825 = vsub.f32 %v809, %v819
    %v826 = vsub.f32 %v810, %v822
    %v827 = vmul.f32 %v823, 1.442695
    %v828 = vpow.pop %v827
    %v829 = vmul.f32 %v824, 1.442695
    %v830 = vpow.pop %v829
    %v831 = vmul.f32 %v825, 1.442695
    %v832 = vpow.pop %v831
    %v833 = vmul.f32 %v826, 1.442695
    %v834 = vpow.pop %v833
    %v835 = vsel %vm400, %v828, 0.0
    %836 = vadd.xlane.f32.xlu0 %v835
    %v837 = vpop.xlane.xlu0 %836
    %v838 = vsel %vm400, %v830, 0.0
    %839 = vadd.xlane.f32.xlu0 %v838
    %v840 = vpop.xlane.xlu0 %839
    %v841 = vsel %vm400, %v832, 0.0
    %842 = vadd.xlane.f32.xlu0 %v841
    %v843 = vpop.xlane.xlu0 %842
    %v844 = vsel %vm400, %v834, 0.0
    %845 = vadd.xlane.f32.xlu0 %v844
    %v846 = vpop.xlane.xlu0 %845
    %v847 = vrcp.pop %v837
    %v848 = vmul.f32 %v837, %v847
    %v849 = vsub.f32 1.0, %v848
    %v850 = vmul.f32 %v847, %v849
    %v851 = vadd.f32 %v847, %v850
    %vm852 = vweird.f32 %v837
    %vm853 = vweird.f32 %v847
    %vm854 = vmor %vm852, %vm853
    %v855 = vsel %vm854, %v847, %v851
    %v856 = vand.u32 2147483647, %v837
    %vm857 = vcmp.eq.f32.partialorder %v856, 8.507059e+37
    %v858 = vand.u32 %v837, 2147483648
    %v859 = vor.u32 1.1754944e-38, %v858
    %v860 = vsel %vm857, %v859, %v855
    %v861 = vmul.f32 %v828, %v860
    %v862 = vrcp.pop %v840
    %v863 = vmul.f32 %v840, %v862
    %v864 = vsub.f32 1.0, %v863
    %v865 = vmul.f32 %v862, %v864
    %v866 = vadd.f32 %v862, %v865
    %vm867 = vweird.f32 %v840
    %vm868 = vweird.f32 %v862
    %vm869 = vmor %vm867, %vm868
    %v870 = vsel %vm869, %v862, %v866
    %v871 = vand.u32 2147483647, %v840
    %vm872 = vcmp.eq.f32.partialorder %v871, 8.507059e+37
    %v873 = vand.u32 %v840, 2147483648
    %v874 = vor.u32 1.1754944e-38, %v873
    %v875 = vsel %vm872, %v874, %v870
    %v876 = vmul.f32 %v830, %v875
    %v877 = vrcp.pop %v843
    %v878 = vmul.f32 %v843, %v877
    %v879 = vsub.f32 1.0, %v878
    %v880 = vmul.f32 %v877, %v879
    %v881 = vadd.f32 %v877, %v880
    %vm882 = vweird.f32 %v843
    %vm883 = vweird.f32 %v877
    %vm884 = vmor %vm882, %vm883
    %v885 = vsel %vm884, %v877, %v881
    %v886 = vand.u32 2147483647, %v843
    %vm887 = vcmp.eq.f32.partialorder %v886, 8.507059e+37
    %v888 = vand.u32 %v843, 2147483648
    %v889 = vor.u32 1.1754944e-38, %v888
    %v890 = vsel %vm887, %v889, %v885
    %v891 = vmul.f32 %v832, %v890
    %v892 = vrcp.pop %v846
    %v893 = vmul.f32 %v846, %v892
    %v894 = vsub.f32 1.0, %v893
    %v895 = vmul.f32 %v892, %v894
    %v896 = vadd.f32 %v892, %v895
    %vm897 = vweird.f32 %v846
    %vm898 = vweird.f32 %v892
    %vm899 = vmor %vm897, %vm898
    %v900 = vsel %vm899, %v892, %v896
    %v901 = vand.u32 2147483647, %v846
    %vm902 = vcmp.eq.f32.partialorder %v901, 8.507059e+37
    %v903 = vand.u32 %v846, 2147483648
    %v904 = vor.u32 1.1754944e-38, %v903
    %v905 = vsel %vm902, %v904, %v900
    %v906 = vmul.f32 %v834, %v905
    %v907 = vpack.c.bf16 %v861, %v861
    %v908 = vpack.c.bf16 %v876, %v876
    %v909 = vpack.c.bf16 %v891, %v891
    %v910 = vpack.c.bf16 %v906, %v906
    %v913 = vunpack.c.l.b16 %v907
    %v914 = vunpack.c.l.b16 %v908
    %v915 = vpack.c.b16 %v914, %v913
    %916 = vrot.lane.b32.xlu0 %v510, 64
    %v917 = vpop.permute.xlu0 %916
    %v920 = vsel %vm400, %v915, 0
    %922 = vmatpush.bf16.msra.mxu0 0
    %923 = vmatpush.bf16.msra.mxu0 0
    %924 = vmatpush.bf16.msra.mxu0 0
    %925 = vmatpush.bf16.msra.mxu0 0
    %926 = vmatpush.bf16.msra.mxu0 0
    %927 = vmatpush.bf16.msra.mxu0 0
    %928 = vmatpush.bf16.msra.mxu0 0
    %929 = vmatpush.bf16.msra.mxu0 %v917
    %930 = vmatmul.bf16.gmra.mxu0 %v920
    %v931 = vpop.f32.mrf.mxu0
    %v932 = vadd.f32 0.0, %v931
    %v933 = vpop.f32.mrf.mxu0
    %v934 = vadd.f32 0.0, %v933
    %935 = vdwg.mxu0
    %v938 = vunpack.c.l.b16 %v909
    %v939 = vunpack.c.l.b16 %v910
    %v940 = vpack.c.b16 %v939, %v938
    %941 = vrot.lane.b32.xlu0 %v538, 64
    %v942 = vpop.permute.xlu0 %941
    %v945 = vsel %vm400, %v940, 0
    %947 = vmatpush.bf16.msra.mxu0 0
    %948 = vmatpush.bf16.msra.mxu0 0
    %949 = vmatpush.bf16.msra.mxu0 0
    %950 = vmatpush.bf16.msra.mxu0 0
    %951 = vmatpush.bf16.msra.mxu0 0
    %952 = vmatpush.bf16.msra.mxu0 0
    %953 = vmatpush.bf16.msra.mxu0 0
    %954 = vmatpush.bf16.msra.mxu0 %v942
    %955 = vmatmul.bf16.gmra.mxu0 %v945
    %v956 = vpop.f32.mrf.mxu0
    %v957 = vadd.f32 0.0, %v956
    %v958 = vpop.f32.mrf.mxu0
    %v959 = vadd.f32 0.0, %v958
    %960 = vdwg.mxu0
    %961 = vrot.lane.b32.xlu0 %v339, 32
    %v962 = vpop.permute.xlu0 %961
    %963 = vrot.lane.b32.xlu0 %v344, 32
    %v964 = vpop.permute.xlu0 %963
    %v966 = vsel %vm345, %v962, 0
    %v969 = vsel %vm345, %v964, 0
    %971 = vmatpush.bf16.xpose.msra.mxu0 0
    %972 = vmatpush.bf16.xpose.msra.mxu0 0
    %973 = vmatpush.bf16.xpose.msra.mxu0 0
    %974 = vmatpush.bf16.xpose.msra.mxu0 0
    %975 = vmatpush.bf16.xpose.msra.mxu0 0
    %976 = vmatpush.bf16.xpose.msra.mxu0 0
    %977 = vmatpush.bf16.xpose.msra.mxu0 0
    %978 = vmatpush.bf16.xpose.msra.mxu0 %v969
    %979 = vmatmul.bf16.gmra.mxu0 %v966
    %v980 = vpop.f32.mrf.mxu0
    %v981 = vadd.f32 0.0, %v980
    %v982 = vpop.f32.mrf.mxu0
    %v983 = vadd.f32 0.0, %v982
    %984 = vdwg.mxu0
    %985 = vrot.lane.b32.xlu0 %v370, 32
    %v986 = vpop.permute.xlu0 %985
    %987 = vrot.lane.b32.xlu0 %v375, 32
    %v988 = vpop.permute.xlu0 %987
    %v990 = vsel %vm345, %v986, 0
    %v993 = vsel %vm345, %v988, 0
    %995 = vmatpush.bf16.xpose.msra.mxu0 0
    %996 = vmatpush.bf16.xpose.msra.mxu0 0
    %997 = vmatpush.bf16.xpose.msra.mxu0 0
    %998 = vmatpush.bf16.xpose.msra.mxu0 0
    %999 = vmatpush.bf16.xpose.msra.mxu0 0
    %1000 = vmatpush.bf16.xpose.msra.mxu0 0
    %1001 = vmatpush.bf16.xpose.msra.mxu0 0
    %1002 = vmatpush.bf16.xpose.msra.mxu0 %v993
    %1003 = vmatmul.bf16.gmra.mxu0 %v990
    %v1004 = vpop.f32.mrf.mxu0
    %v1005 = vadd.f32 0.0, %v1004
    %v1006 = vpop.f32.mrf.mxu0
    %v1007 = vadd.f32 0.0, %v1006
    %1008 = vdwg.mxu0
    %v1009 = vmul.f32 %v981, 0.17677669
    %v1010 = vmul.f32 %v983, 0.17677669
    %v1011 = vmul.f32 %v1005, 0.17677669
    %v1012 = vmul.f32 %v1007, 0.17677669
    %v1013 = vsel %vm400, %v1009, -inf
    %1014 = vmax.xlane.f32.xlu0 %v1013
    %v1015 = vpop.xlane.xlu0 %1014
    %v1016 = vsel %vm400, %v1010, -inf
    %1017 = vmax.xlane.f32.xlu0 %v1016
    %v1018 = vpop.xlane.xlu0 %1017
    %v1019 = vsel %vm400, %v1011, -inf
    %1020 = vmax.xlane.f32.xlu0 %v1019
    %v1021 = vpop.xlane.xlu0 %1020
    %v1022 = vsel %vm400, %v1012, -inf
    %1023 = vmax.xlane.f32.xlu0 %v1022
    %v1024 = vpop.xlane.xlu0 %1023
    %v1025 = vsub.f32 %v1009, %v1015
    %v1026 = vsub.f32 %v1010, %v1018
    %v1027 = vsub.f32 %v1011, %v1021
    %v1028 = vsub.f32 %v1012, %v1024
    %v1029 = vmul.f32 %v1025, 1.442695
    %v1030 = vpow.pop %v1029
    %v1031 = vmul.f32 %v1026, 1.442695
    %v1032 = vpow.pop %v1031
    %v1033 = vmul.f32 %v1027, 1.442695
    %v1034 = vpow.pop %v1033
    %v1035 = vmul.f32 %v1028, 1.442695
    %v1036 = vpow.pop %v1035
    %v1037 = vsel %vm400, %v1030, 0.0
    %1038 = vadd.xlane.f32.xlu0 %v1037
    %v1039 = vpop.xlane.xlu0 %1038
    %v1040 = vsel %vm400, %v1032, 0.0
    %1041 = vadd.xlane.f32.xlu0 %v1040
    %v1042 = vpop.xlane.xlu0 %1041
    %v1043 = vsel %vm400, %v1034, 0.0
    %1044 = vadd.xlane.f32.xlu0 %v1043
    %v1045 = vpop.xlane.xlu0 %1044
    %v1046 = vsel %vm400, %v1036, 0.0
    %1047 = vadd.xlane.f32.xlu0 %v1046
    %v1048 = vpop.xlane.xlu0 %1047
    %v1049 = vrcp.pop %v1039
    %v1050 = vmul.f32 %v1039, %v1049
    %v1051 = vsub.f32 1.0, %v1050
    %v1052 = vmul.f32 %v1049, %v1051
    %v1053 = vadd.f32 %v1049, %v1052
    %vm1054 = vweird.f32 %v1039
    %vm1055 = vweird.f32 %v1049
    %vm1056 = vmor %vm1054, %vm1055
    %v1057 = vsel %vm1056, %v1049, %v1053
    %v1058 = vand.u32 2147483647, %v1039
    %vm1059 = vcmp.eq.f32.partialorder %v1058, 8.507059e+37
    %v1060 = vand.u32 %v1039, 2147483648
    %v1061 = vor.u32 1.1754944e-38, %v1060
    %v1062 = vsel %vm1059, %v1061, %v1057
    %v1063 = vmul.f32 %v1030, %v1062
    %v1064 = vrcp.pop %v1042
    %v1065 = vmul.f32 %v1042, %v1064
    %v1066 = vsub.f32 1.0, %v1065
    %v1067 = vmul.f32 %v1064, %v1066
    %v1068 = vadd.f32 %v1064, %v1067
    %vm1069 = vweird.f32 %v1042
    %vm1070 = vweird.f32 %v1064
    %vm1071 = vmor %vm1069, %vm1070
    %v1072 = vsel %vm1071, %v1064, %v1068
    %v1073 = vand.u32 2147483647, %v1042
    %vm1074 = vcmp.eq.f32.partialorder %v1073, 8.507059e+37
    %v1075 = vand.u32 %v1042, 2147483648
    %v1076 = vor.u32 1.1754944e-38, %v1075
    %v1077 = vsel %vm1074, %v1076, %v1072
    %v1078 = vmul.f32 %v1032, %v1077
    %v1079 = vrcp.pop %v1045
    %v1080 = vmul.f32 %v1045, %v1079
    %v1081 = vsub.f32 1.0, %v1080
    %v1082 = vmul.f32 %v1079, %v1081
    %v1083 = vadd.f32 %v1079, %v1082
    %vm1084 = vweird.f32 %v1045
    %vm1085 = vweird.f32 %v1079
    %vm1086 = vmor %vm1084, %vm1085
    %v1087 = vsel %vm1086, %v1079, %v1083
    %v1088 = vand.u32 2147483647, %v1045
    %vm1089 = vcmp.eq.f32.partialorder %v1088, 8.507059e+37
    %v1090 = vand.u32 %v1045, 2147483648
    %v1091 = vor.u32 1.1754944e-38, %v1090
    %v1092 = vsel %vm1089, %v1091, %v1087
    %v1093 = vmul.f32 %v1034, %v1092
    %v1094 = vrcp.pop %v1048
    %v1095 = vmul.f32 %v1048, %v1094
    %v1096 = vsub.f32 1.0, %v1095
    %v1097 = vmul.f32 %v1094, %v1096
    %v1098 = vadd.f32 %v1094, %v1097
    %vm1099 = vweird.f32 %v1048
    %vm1100 = vweird.f32 %v1094
    %vm1101 = vmor %vm1099, %vm1100
    %v1102 = vsel %vm1101, %v1094, %v1098
    %v1103 = vand.u32 2147483647, %v1048
    %vm1104 = vcmp.eq.f32.partialorder %v1103, 8.507059e+37
    %v1105 = vand.u32 %v1048, 2147483648
    %v1106 = vor.u32 1.1754944e-38, %v1105
    %v1107 = vsel %vm1104, %v1106, %v1102
    %v1108 = vmul.f32 %v1036, %v1107
    %v1109 = vpack.c.bf16 %v1063, %v1063
    %v1110 = vpack.c.bf16 %v1078, %v1078
    %v1111 = vpack.c.bf16 %v1093, %v1093
    %v1112 = vpack.c.bf16 %v1108, %v1108
    %v1115 = vunpack.c.l.b16 %v1109
    %v1116 = vunpack.c.l.b16 %v1110
    %v1117 = vpack.c.b16 %v1116, %v1115
    %1118 = vrot.lane.b32.xlu0 %v510, 32
    %v1119 = vpop.permute.xlu0 %1118
    %v1122 = vsel %vm400, %v1117, 0
    %1124 = vmatpush.bf16.msra.mxu0 0
    %1125 = vmatpush.bf16.msra.mxu0 0
    %1126 = vmatpush.bf16.msra.mxu0 0
    %1127 = vmatpush.bf16.msra.mxu0 0
    %1128 = vmatpush.bf16.msra.mxu0 0
    %1129 = vmatpush.bf16.msra.mxu0 0
    %1130 = vmatpush.bf16.msra.mxu0 0
    %1131 = vmatpush.bf16.msra.mxu0 %v1119
    %1132 = vmatmul.bf16.gmra.mxu0 %v1122
    %v1133 = vpop.f32.mrf.mxu0
    %v1134 = vadd.f32 0.0, %v1133
    %v1135 = vpop.f32.mrf.mxu0
    %v1136 = vadd.f32 0.0, %v1135
    %1137 = vdwg.mxu0
    %v1140 = vunpack.c.l.b16 %v1111
    %v1141 = vunpack.c.l.b16 %v1112
    %v1142 = vpack.c.b16 %v1141, %v1140
    %1143 = vrot.lane.b32.xlu0 %v538, 32
    %v1144 = vpop.permute.xlu0 %1143
    %v1147 = vsel %vm400, %v1142, 0
    %1149 = vmatpush.bf16.msra.mxu0 0
    %1150 = vmatpush.bf16.msra.mxu0 0
    %1151 = vmatpush.bf16.msra.mxu0 0
    %1152 = vmatpush.bf16.msra.mxu0 0
    %1153 = vmatpush.bf16.msra.mxu0 0
    %1154 = vmatpush.bf16.msra.mxu0 0
    %1155 = vmatpush.bf16.msra.mxu0 0
    %1156 = vmatpush.bf16.msra.mxu0 %v1144
    %1157 = vmatmul.bf16.gmra.mxu0 %v1147
    %v1158 = vpop.f32.mrf.mxu0
    %v1159 = vadd.f32 0.0, %v1158
    %v1160 = vpop.f32.mrf.mxu0
    %v1161 = vadd.f32 0.0, %v1160
    %1162 = vdwg.mxu0
    %1167 = vrot.lane.b32.xlu0 %v730, 32
    %v1168 = vpop.permute.xlu0 %1167
    %1169 = vrot.lane.b32.xlu0 %v732, 32
    %v1170 = vpop.permute.xlu0 %1169
    %1171 = vrot.lane.b32.xlu0 %v755, 32
    %v1172 = vpop.permute.xlu0 %1171
    %1173 = vrot.lane.b32.xlu0 %v757, 32
    %v1174 = vpop.permute.xlu0 %1173
    %1183 = vrot.lane.b32.xlu0 %v932, 64
    %v1184 = vpop.permute.xlu0 %1183
    %1185 = vrot.lane.b32.xlu0 %v934, 64
    %v1186 = vpop.permute.xlu0 %1185
    %1187 = vrot.lane.b32.xlu0 %v957, 64
    %v1188 = vpop.permute.xlu0 %1187
    %1189 = vrot.lane.b32.xlu0 %v959, 64
    %v1190 = vpop.permute.xlu0 %1189
    %1199 = vrot.lane.b32.xlu0 %v1134, 96
    %v1200 = vpop.permute.xlu0 %1199
    %1201 = vrot.lane.b32.xlu0 %v1136, 96
    %v1202 = vpop.permute.xlu0 %1201
    %1203 = vrot.lane.b32.xlu0 %v1159, 96
    %v1204 = vpop.permute.xlu0 %1203
    %1205 = vrot.lane.b32.xlu0 %v1161, 96
    %v1206 = vpop.permute.xlu0 %1205
    %v1211 = vsel %vm345, %v525, %v1168
    %v1212 = vsel %vm345, %v527, %v1170
    %v1213 = vsel %vm345, %v553, %v1172
    %v1214 = vsel %vm345, %v555, %v1174
    %vm1215 = vcmask 523264
    %v1216 = vsel %vm1215, %v1211, %v1184
    %v1217 = vsel %vm1215, %v1212, %v1186
    %v1218 = vsel %vm1215, %v1213, %v1188
    %v1219 = vsel %vm1215, %v1214, %v1190
    %vm1220 = vcmask 785408
    %v1221 = vsel %vm1220, %v1216, %v1200
    %v1222 = vsel %vm1220, %v1217, %v1202
    %v1223 = vsel %vm1220, %v1218, %v1204
    %v1224 = vsel %vm1220, %v1219, %v1206
    %v1225 = vpack.c.bf16 %v1222, %v1221
    %v1226 = vpack.c.bf16 %v1224, %v1223
    %v1227 = vld [vmem:[%s3] sm:$0xf]
    %v1228 = vld [vmem:[%s3 + $0x4] sm:$0xf]
    %v1229 = vld [vmem:[%s3 + $0x8] sm:$0xf]
    %v1230 = vld [vmem:[%s3 + $0xc] sm:$0xf]
    %v1231 = vld [vmem:[%s3 + $0x10] sm:$0xf]
    %v1232 = vld [vmem:[%s3 + $0x14] sm:$0xf]
    %v1233 = vld [vmem:[%s3 + $0x18] sm:$0xf]
    %v1234 = vld [vmem:[%s3 + $0x1c] sm:$0xf]
    %v1235 = vld [vmem:[%s3 + $0x20] sm:$0xf]
    %v1236 = vld [vmem:[%s3 + $0x24] sm:$0xf]
    %v1237 = vld [vmem:[%s3 + $0x28] sm:$0xf]
    %v1238 = vld [vmem:[%s3 + $0x2c] sm:$0xf]
    %v1239 = vld [vmem:[%s3 + $0x30] sm:$0xf]
    %v1240 = vld [vmem:[%s3 + $0x34] sm:$0xf]
    %v1241 = vld [vmem:[%s3 + $0x38] sm:$0xf]
    %v1242 = vld [vmem:[%s3 + $0x3c] sm:$0xf]
    %v1243 = vld [vmem:[%s4] sm:$0x1]
    %v1245 = vperm.slane %v1243, 0
    %v1263 = vunpack.c.l.b16 %v1227
    %v1264 = vunpack.c.l.b16 %v1228
    %v1265 = vunpack.c.l.b16 %v1229
    %v1266 = vunpack.c.l.b16 %v1230
    %v1267 = vunpack.c.l.b16 %v1231
    %v1268 = vunpack.c.l.b16 %v1232
    %v1269 = vunpack.c.l.b16 %v1233
    %v1270 = vunpack.c.l.b16 %v1234
    %v1271 = vunpack.c.l.b16 %v1235
    %v1272 = vunpack.c.l.b16 %v1236
    %v1273 = vunpack.c.l.b16 %v1237
    %v1274 = vunpack.c.l.b16 %v1238
    %v1275 = vunpack.c.l.b16 %v1239
    %v1276 = vunpack.c.l.b16 %v1240
    %v1277 = vunpack.c.l.b16 %v1241
    %v1278 = vunpack.c.l.b16 %v1242
    %v1279 = vpack.c.b16 %v1264, %v1263
    %v1280 = vpack.c.b16 %v1266, %v1265
    %v1281 = vpack.c.b16 %v1268, %v1267
    %v1282 = vpack.c.b16 %v1270, %v1269
    %v1283 = vpack.c.b16 %v1272, %v1271
    %v1284 = vpack.c.b16 %v1274, %v1273
    %v1285 = vpack.c.b16 %v1276, %v1275
    %v1286 = vpack.c.b16 %v1278, %v1277
    %1295 = vmatpush.bf16.msra.mxu0 %v1286
    %1296 = vmatpush.bf16.msra.mxu0 %v1285
    %1297 = vmatpush.bf16.msra.mxu0 %v1284
    %1298 = vmatpush.bf16.msra.mxu0 %v1283
    %1299 = vmatpush.bf16.msra.mxu0 %v1282
    %1300 = vmatpush.bf16.msra.mxu0 %v1281
    %1301 = vmatpush.bf16.msra.mxu0 %v1280
    %1302 = vmatpush.bf16.msra.mxu0 %v1279
    %1303 = vmatmul.bf16.gmra.mxu0 %v1225
    %v1304 = vpop.f32.mrf.mxu0
    %v1305 = vadd.f32 %v1245, %v1304
    %v1306 = vpop.f32.mrf.mxu0
    %v1307 = vadd.f32 %v1245, %v1306
    %1308 = vmatmul.bf16.gmra.mxu0 %v1226
    %v1309 = vpop.f32.mrf.mxu0
    %v1310 = vadd.f32 %v1245, %v1309
    %v1311 = vpop.f32.mrf.mxu0
    %v1312 = vadd.f32 %v1245, %v1311
    %1313 = vdwg.mxu0
    %v1314 = vadd.f32 %v1305, %v92
    %v1315 = vadd.f32 %v1307, %v93
    %v1316 = vadd.f32 %v1310, %v94
    %v1317 = vadd.f32 %v1312, %v95
    %v1318 = vld [vmem:[%s5] sm:$0x1]
    %v1319 = vld [vmem:[%s6] sm:$0x1]
    %1320 = vadd.xlane.f32.xlu0 %v1314
    %v1321 = vpop.xlane.xlu0 %1320
    %1322 = vadd.xlane.f32.xlu0 %v1315
    %v1323 = vpop.xlane.xlu0 %1322
    %1324 = vadd.xlane.f32.xlu0 %v1316
    %v1325 = vpop.xlane.xlu0 %1324
    %1326 = vadd.xlane.f32.xlu0 %v1317
    %v1327 = vpop.xlane.xlu0 %1326
    %v1328 = vrcp.pop 128.0
    %v1329 = vmul.f32 128.0, %v1328
    %v1330 = vsub.f32 1.0, %v1329
    %v1331 = vmul.f32 %v1328, %v1330
    %v1332 = vadd.f32 %v1328, %v1331
    %vm1333 = vweird.f32 %v1328
    %v1334 = vsel %vm1333, %v1328, %v1332
    %v1335 = vmul.f32 %v1321, %v1334
    %v1336 = vmul.f32 %v1323, %v1334
    %v1337 = vmul.f32 %v1325, %v1334
    %v1338 = vmul.f32 %v1327, %v1334
    %v1339 = vsub.f32 %v1314, %v1335
    %v1340 = vsub.f32 %v1315, %v1336
    %v1341 = vsub.f32 %v1316, %v1337
    %v1342 = vsub.f32 %v1317, %v1338
    %v1343 = vmul.f32 %v1339, %v1339
    %v1344 = vmul.f32 %v1340, %v1340
    %v1345 = vmul.f32 %v1341, %v1341
    %v1346 = vmul.f32 %v1342, %v1342
    %1347 = vadd.xlane.f32.xlu0 %v1343
    %v1348 = vpop.xlane.xlu0 %1347
    %1349 = vadd.xlane.f32.xlu0 %v1344
    %v1350 = vpop.xlane.xlu0 %1349
    %1351 = vadd.xlane.f32.xlu0 %v1345
    %v1352 = vpop.xlane.xlu0 %1351
    %1353 = vadd.xlane.f32.xlu0 %v1346
    %v1354 = vpop.xlane.xlu0 %1353
    %v1355 = vmul.f32 %v1348, %v1334
    %v1356 = vmul.f32 %v1350, %v1334
    %v1357 = vmul.f32 %v1352, %v1334
    %v1358 = vmul.f32 %v1354, %v1334
    %v1359 = vadd.f32 %v1355, 1e-05
    %v1360 = vadd.f32 %v1356, 1e-05
    %v1361 = vadd.f32 %v1357, 1e-05
    %v1362 = vadd.f32 %v1358, 1e-05
    %v1363 = vrsqrt.pop %v1359
    %v1364 = vmul.f32 %v1363, %v1359
    %v1365 = vmul.f32 %v1364, %v1363
    %v1366 = vmul.f32 0.5, %v1365
    %v1367 = vsub.f32 1.5, %v1366
    %v1368 = vmul.f32 %v1363, %v1367
    %vm1369 = vweird.f32 %v1359
    %vm1370 = vweird.f32 %v1363
    %vm1371 = vmor %vm1369, %vm1370
    %v1372 = vsel %vm1371, %v1363, %v1368
    %v1373 = vrsqrt.pop %v1360
    %v1374 = vmul.f32 %v1373, %v1360
    %v1375 = vmul.f32 %v1374, %v1373
    %v1376 = vmul.f32 0.5, %v1375
    %v1377 = vsub.f32 1.5, %v1376
    %v1378 = vmul.f32 %v1373, %v1377
    %vm1379 = vweird.f32 %v1360
    %vm1380 = vweird.f32 %v1373
    %vm1381 = vmor %vm1379, %vm1380
    %v1382 = vsel %vm1381, %v1373, %v1378
    %v1383 = vrsqrt.pop %v1361
    %v1384 = vmul.f32 %v1383, %v1361
    %v1385 = vmul.f32 %v1384, %v1383
    %v1386 = vmul.f32 0.5, %v1385
    %v1387 = vsub.f32 1.5, %v1386
    %v1388 = vmul.f32 %v1383, %v1387
    %vm1389 = vweird.f32 %v1361
    %vm1390 = vweird.f32 %v1383
    %vm1391 = vmor %vm1389, %vm1390
    %v1392 = vsel %vm1391, %v1383, %v1388
    %v1393 = vrsqrt.pop %v1362
    %v1394 = vmul.f32 %v1393, %v1362
    %v1395 = vmul.f32 %v1394, %v1393
    %v1396 = vmul.f32 0.5, %v1395
    %v1397 = vsub.f32 1.5, %v1396
    %v1398 = vmul.f32 %v1393, %v1397
    %vm1399 = vweird.f32 %v1362
    %vm1400 = vweird.f32 %v1393
    %vm1401 = vmor %vm1399, %vm1400
    %v1402 = vsel %vm1401, %v1393, %v1398
    %v1403 = vmul.f32 %v1339, %v1372
    %v1404 = vmul.f32 %v1340, %v1382
    %v1405 = vmul.f32 %v1341, %v1392
    %v1406 = vmul.f32 %v1342, %v1402
    %v1408 = vperm.slane %v1318, 0
    %v1410 = vmul.f32 %v1403, %v1408
    %v1411 = vmul.f32 %v1404, %v1408
    %v1412 = vmul.f32 %v1405, %v1408
    %v1413 = vmul.f32 %v1406, %v1408
    %v1415 = vperm.slane %v1319, 0
    %v1417 = vadd.f32 %v1410, %v1415
    %v1418 = vadd.f32 %v1411, %v1415
    %v1419 = vadd.f32 %v1412, %v1415
    %v1420 = vadd.f32 %v1413, %v1415
    %v1421 = vpack.c.bf16 %v1418, %v1417
    %v1422 = vpack.c.bf16 %v1420, %v1419
    %v1423 = vld [vmem:[#allocation4] sm:$0xff]
    %v1424 = vld [vmem:[#allocation4 + $0x8] sm:$0xff]
    %v1425 = vld [vmem:[#allocation4 + $0x10] sm:$0xff]
    %v1426 = vld [vmem:[#allocation4 + $0x18] sm:$0xff]
    %v1427 = vld [vmem:[#allocation4 + $0x20] sm:$0xff]
    %v1428 = vld [vmem:[#allocation4 + $0x28] sm:$0xff]
    %v1429 = vld [vmem:[#allocation4 + $0x30] sm:$0xff]
    %v1430 = vld [vmem:[#allocation4 + $0x38] sm:$0xff]
    %v1431 = vld [vmem:[#allocation4 + $0x40] sm:$0xff]
    %v1432 = vld [vmem:[#allocation4 + $0x48] sm:$0xff]
    %v1433 = vld [vmem:[#allocation4 + $0x50] sm:$0xff]
    %v1434 = vld [vmem:[#allocation4 + $0x58] sm:$0xff]
    %v1435 = vld [vmem:[#allocation4 + $0x60] sm:$0xff]
    %v1436 = vld [vmem:[#allocation4 + $0x68] sm:$0xff]
    %v1437 = vld [vmem:[#allocation4 + $0x70] sm:$0xff]
    %v1438 = vld [vmem:[#allocation4 + $0x78] sm:$0xff]
    %v1439 = vld [vmem:[%s8] sm:$0x3]
    %v1441 = vperm.slane %v1439, 0
    %v1442 = vperm.slane %v1439, 1
    %v1461 = vunpack.c.l.b16 %v1423
    %v1462 = vunpack.c.h.b16 %v1423
    %v1463 = vunpack.c.l.b16 %v1424
    %v1464 = vunpack.c.h.b16 %v1424
    %v1465 = vunpack.c.l.b16 %v1425
    %v1466 = vunpack.c.h.b16 %v1425
    %v1467 = vunpack.c.l.b16 %v1426
    %v1468 = vunpack.c.h.b16 %v1426
    %v1469 = vunpack.c.l.b16 %v1427
    %v1470 = vunpack.c.h.b16 %v1427
    %v1471 = vunpack.c.l.b16 %v1428
    %v1472 = vunpack.c.h.b16 %v1428
    %v1473 = vunpack.c.l.b16 %v1429
    %v1474 = vunpack.c.h.b16 %v1429
    %v1475 = vunpack.c.l.b16 %v1430
    %v1476 = vunpack.c.h.b16 %v1430
    %v1477 = vunpack.c.l.b16 %v1431
    %v1478 = vunpack.c.h.b16 %v1431
    %v1479 = vunpack.c.l.b16 %v1432
    %v1480 = vunpack.c.h.b16 %v1432
    %v1481 = vunpack.c.l.b16 %v1433
    %v1482 = vunpack.c.h.b16 %v1433
    %v1483 = vunpack.c.l.b16 %v1434
    %v1484 = vunpack.c.h.b16 %v1434
    %v1485 = vunpack.c.l.b16 %v1435
    %v1486 = vunpack.c.h.b16 %v1435
    %v1487 = vunpack.c.l.b16 %v1436
    %v1488 = vunpack.c.h.b16 %v1436
    %v1489 = vunpack.c.l.b16 %v1437
    %v1490 = vunpack.c.h.b16 %v1437
    %v1491 = vunpack.c.l.b16 %v1438
    %v1492 = vunpack.c.h.b16 %v1438
    %v1493 = vpack.c.b16 %v1463, %v1461
    %v1494 = vpack.c.b16 %v1464, %v1462
    %v1495 = vpack.c.b16 %v1467, %v1465
    %v1496 = vpack.c.b16 %v1468, %v1466
    %v1497 = vpack.c.b16 %v1471, %v1469
    %v1498 = vpack.c.b16 %v1472, %v1470
    %v1499 = vpack.c.b16 %v1475, %v1473
    %v1500 = vpack.c.b16 %v1476, %v1474
    %v1501 = vpack.c.b16 %v1479, %v1477
    %v1502 = vpack.c.b16 %v1480, %v1478
    %v1503 = vpack.c.b16 %v1483, %v1481
    %v1504 = vpack.c.b16 %v1484, %v1482
    %v1505 = vpack.c.b16 %v1487, %v1485
    %v1506 = vpack.c.b16 %v1488, %v1486
    %v1507 = vpack.c.b16 %v1491, %v1489
    %v1508 = vpack.c.b16 %v1492, %v1490
    %1525 = vmatpush.bf16.msra.mxu0 %v1507
    %1526 = vmatpush.bf16.msra.mxu0 %v1505
    %1527 = vmatpush.bf16.msra.mxu0 %v1503
    %1528 = vmatpush.bf16.msra.mxu0 %v1501
    %1529 = vmatpush.bf16.msra.mxu0 %v1499
    %1530 = vmatpush.bf16.msra.mxu0 %v1497
    %1531 = vmatpush.bf16.msra.mxu0 %v1495
    %1532 = vmatpush.bf16.msra.mxu0 %v1493
    %1533 = vmatmul.bf16.gmra.mxu0 %v1421
    %v1534 = vpop.f32.mrf.mxu0
    %v1535 = vadd.f32 %v1441, %v1534
    %v1536 = vpop.f32.mrf.mxu0
    %v1537 = vadd.f32 %v1441, %v1536
    %1538 = vmatmul.bf16.gmra.mxu0 %v1422
    %v1539 = vpop.f32.mrf.mxu0
    %v1540 = vadd.f32 %v1441, %v1539
    %v1541 = vpop.f32.mrf.mxu0
    %v1542 = vadd.f32 %v1441, %v1541
    %1543 = vdwg.mxu0
    %1544 = vmatpush.bf16.msra.mxu0 %v1508
    %1545 = vmatpush.bf16.msra.mxu0 %v1506
    %1546 = vmatpush.bf16.msra.mxu0 %v1504
    %1547 = vmatpush.bf16.msra.mxu0 %v1502
    %1548 = vmatpush.bf16.msra.mxu0 %v1500
    %1549 = vmatpush.bf16.msra.mxu0 %v1498
    %1550 = vmatpush.bf16.msra.mxu0 %v1496
    %1551 = vmatpush.bf16.msra.mxu0 %v1494
    %1552 = vmatmul.bf16.gmra.mxu0 %v1421
    %v1553 = vpop.f32.mrf.mxu0
    %v1554 = vadd.f32 %v1442, %v1553
    %v1555 = vpop.f32.mrf.mxu0
    %v1556 = vadd.f32 %v1442, %v1555
    %1557 = vmatmul.bf16.gmra.mxu0 %v1422
    %v1558 = vpop.f32.mrf.mxu0
    %v1559 = vadd.f32 %v1442, %v1558
    %v1560 = vpop.f32.mrf.mxu0
    %v1561 = vadd.f32 %v1442, %v1560
    %1562 = vdwg.mxu0
    %v1563 = vmax.f32 %v1535, 0.0
    %v1564 = vmax.f32 %v1554, 0.0
    %v1565 = vmax.f32 %v1537, 0.0
    %v1566 = vmax.f32 %v1556, 0.0
    %v1567 = vmax.f32 %v1540, 0.0
    %v1568 = vmax.f32 %v1559, 0.0
    %v1569 = vmax.f32 %v1542, 0.0
    %v1570 = vmax.f32 %v1561, 0.0
    %v1571 = vpack.c.bf16 %v1565, %v1563
    %v1572 = vpack.c.bf16 %v1566, %v1564
    %v1573 = vpack.c.bf16 %v1569, %v1567
    %v1574 = vpack.c.bf16 %v1570, %v1568
    %v1575 = vld [vmem:[#allocation6] sm:$0xf]
    %v1576 = vld [vmem:[#allocation6 + $0x4] sm:$0xf]
    %v1577 = vld [vmem:[#allocation6 + $0x8] sm:$0xf]
    %v1578 = vld [vmem:[#allocation6 + $0xc] sm:$0xf]
    %v1579 = vld [vmem:[#allocation6 + $0x10] sm:$0xf]
    %v1580 = vld [vmem:[#allocation6 + $0x14] sm:$0xf]
    %v1581 = vld [vmem:[#allocation6 + $0x18] sm:$0xf]
    %v1582 = vld [vmem:[#allocation6 + $0x1c] sm:$0xf]
    %v1583 = vld [vmem:[#allocation6 + $0x20] sm:$0xf]
    %v1584 = vld [vmem:[#allocation6 + $0x24] sm:$0xf]
    %v1585 = vld [vmem:[#allocation6 + $0x28] sm:$0xf]
    %v1586 = vld [vmem:[#allocation6 + $0x2c] sm:$0xf]
    %v1587 = vld [vmem:[#allocation6 + $0x30] sm:$0xf]
    %v1588 = vld [vmem:[#allocation6 + $0x34] sm:$0xf]
    %v1589 = vld [vmem:[#allocation6 + $0x38] sm:$0xf]
    %v1590 = vld [vmem:[#allocation6 + $0x3c] sm:$0xf]
    %v1591 = vld [vmem:[#allocation6 + $0x40] sm:$0xf]
    %v1592 = vld [vmem:[#allocation6 + $0x44] sm:$0xf]
    %v1593 = vld [vmem:[#allocation6 + $0x48] sm:$0xf]
    %v1594 = vld [vmem:[#allocation6 + $0x4c] sm:$0xf]
    %v1595 = vld [vmem:[#allocation6 + $0x50] sm:$0xf]
    %v1596 = vld [vmem:[#allocation6 + $0x54] sm:$0xf]
    %v1597 = vld [vmem:[#allocation6 + $0x58] sm:$0xf]
    %v1598 = vld [vmem:[#allocation6 + $0x5c] sm:$0xf]
    %v1599 = vld [vmem:[#allocation6 + $0x60] sm:$0xf]
    %v1600 = vld [vmem:[#allocation6 + $0x64] sm:$0xf]
    %v1601 = vld [vmem:[#allocation6 + $0x68] sm:$0xf]
    %v1602 = vld [vmem:[#allocation6 + $0x6c] sm:$0xf]
    %v1603 = vld [vmem:[#allocation6 + $0x70] sm:$0xf]
    %v1604 = vld [vmem:[#allocation6 + $0x74] sm:$0xf]
    %v1605 = vld [vmem:[#allocation6 + $0x78] sm:$0xf]
    %v1606 = vld [vmem:[#allocation6 + $0x7c] sm:$0xf]
    %v1607 = vld [vmem:[%s10] sm:$0x1]
    %v1609 = vperm.slane %v1607, 0
    %v1643 = vunpack.c.l.b16 %v1575
    %v1644 = vunpack.c.l.b16 %v1576
    %v1645 = vunpack.c.l.b16 %v1577
    %v1646 = vunpack.c.l.b16 %v1578
    %v1647 = vunpack.c.l.b16 %v1579
    %v1648 = vunpack.c.l.b16 %v1580
    %v1649 = vunpack.c.l.b16 %v1581
    %v1650 = vunpack.c.l.b16 %v1582
    %v1651 = vunpack.c.l.b16 %v1583
    %v1652 = vunpack.c.l.b16 %v1584
    %v1653 = vunpack.c.l.b16 %v1585
    %v1654 = vunpack.c.l.b16 %v1586
    %v1655 = vunpack.c.l.b16 %v1587
    %v1656 = vunpack.c.l.b16 %v1588
    %v1657 = vunpack.c.l.b16 %v1589
    %v1658 = vunpack.c.l.b16 %v1590
    %v1659 = vunpack.c.l.b16 %v1591
    %v1660 = vunpack.c.l.b16 %v1592
    %v1661 = vunpack.c.l.b16 %v1593
    %v1662 = vunpack.c.l.b16 %v1594
    %v1663 = vunpack.c.l.b16 %v1595
    %v1664 = vunpack.c.l.b16 %v1596
    %v1665 = vunpack.c.l.b16 %v1597
    %v1666 = vunpack.c.l.b16 %v1598
    %v1667 = vunpack.c.l.b16 %v1599
    %v1668 = vunpack.c.l.b16 %v1600
    %v1669 = vunpack.c.l.b16 %v1601
    %v1670 = vunpack.c.l.b16 %v1602
    %v1671 = vunpack.c.l.b16 %v1603
    %v1672 = vunpack.c.l.b16 %v1604
    %v1673 = vunpack.c.l.b16 %v1605
    %v1674 = vunpack.c.l.b16 %v1606
    %v1675 = vpack.c.b16 %v1644, %v1643
    %v1676 = vpack.c.b16 %v1646, %v1645
    %v1677 = vpack.c.b16 %v1648, %v1647
    %v1678 = vpack.c.b16 %v1650, %v1649
    %v1679 = vpack.c.b16 %v1652, %v1651
    %v1680 = vpack.c.b16 %v1654, %v1653
    %v1681 = vpack.c.b16 %v1656, %v1655
    %v1682 = vpack.c.b16 %v1658, %v1657
    %v1683 = vpack.c.b16 %v1660, %v1659
    %v1684 = vpack.c.b16 %v1662, %v1661
    %v1685 = vpack.c.b16 %v1664, %v1663
    %v1686 = vpack.c.b16 %v1666, %v1665
    %v1687 = vpack.c.b16 %v1668, %v1667
    %v1688 = vpack.c.b16 %v1670, %v1669
    %v1689 = vpack.c.b16 %v1672, %v1671
    %v1690 = vpack.c.b16 %v1674, %v1673
    %1707 = vmatpush.bf16.msra.mxu0 %v1682
    %1708 = vmatpush.bf16.msra.mxu0 %v1681
    %1709 = vmatpush.bf16.msra.mxu0 %v1680
    %1710 = vmatpush.bf16.msra.mxu0 %v1679
    %1711 = vmatpush.bf16.msra.mxu0 %v1678
    %1712 = vmatpush.bf16.msra.mxu0 %v1677
    %1713 = vmatpush.bf16.msra.mxu0 %v1676
    %1714 = vmatpush.bf16.msra.mxu0 %v1675
    %1715 = vmatmul.bf16.gmra.mxu0 %v1571
    %v1716 = vpop.f32.mrf.mxu0
    %v1717 = vadd.f32 %v1609, %v1716
    %v1718 = vpop.f32.mrf.mxu0
    %v1719 = vadd.f32 %v1609, %v1718
    %1720 = vmatmul.bf16.gmra.mxu0 %v1573
    %v1721 = vpop.f32.mrf.mxu0
    %v1722 = vadd.f32 %v1609, %v1721
    %v1723 = vpop.f32.mrf.mxu0
    %v1724 = vadd.f32 %v1609, %v1723
    %1725 = vdwg.mxu0
    %1726 = vmatpush.bf16.msra.mxu0 %v1690
    %1727 = vmatpush.bf16.msra.mxu0 %v1689
    %1728 = vmatpush.bf16.msra.mxu0 %v1688
    %1729 = vmatpush.bf16.msra.mxu0 %v1687
    %1730 = vmatpush.bf16.msra.mxu0 %v1686
    %1731 = vmatpush.bf16.msra.mxu0 %v1685
    %1732 = vmatpush.bf16.msra.mxu0 %v1684
    %1733 = vmatpush.bf16.msra.mxu0 %v1683
    %1734 = vmatmul.bf16.gmra.mxu0 %v1572
    %v1735 = vpop.f32.mrf.mxu0
    %v1736 = vadd.f32 %v1717, %v1735
    %v1737 = vpop.f32.mrf.mxu0
    %v1738 = vadd.f32 %v1719, %v1737
    %1739 = vmatmul.bf16.gmra.mxu0 %v1574
    %v1740 = vpop.f32.mrf.mxu0
    %v1741 = vadd.f32 %v1722, %v1740
    %v1742 = vpop.f32.mrf.mxu0
    %v1743 = vadd.f32 %v1724, %v1742
    %1744 = vdwg.mxu0
    %v1745 = vadd.f32 %v1736, %v1417
    %v1746 = vadd.f32 %v1738, %v1418
    %v1747 = vadd.f32 %v1741, %v1419
    %v1748 = vadd.f32 %v1743, %v1420
    %v1749 = vld [vmem:[%s11] sm:$0x1]
    %v1750 = vld [vmem:[%s12] sm:$0x1]
    %1751 = vadd.xlane.f32.xlu0 %v1745
    %v1752 = vpop.xlane.xlu0 %1751
    %1753 = vadd.xlane.f32.xlu0 %v1746
    %v1754 = vpop.xlane.xlu0 %1753
    %1755 = vadd.xlane.f32.xlu0 %v1747
    %v1756 = vpop.xlane.xlu0 %1755
    %1757 = vadd.xlane.f32.xlu0 %v1748
    %v1758 = vpop.xlane.xlu0 %1757
    %v1759 = vmul.f32 %v1752, %v1334
    %v1760 = vmul.f32 %v1754, %v1334
    %v1761 = vmul.f32 %v1756, %v1334
    %v1762 = vmul.f32 %v1758, %v1334
    %v1763 = vsub.f32 %v1745, %v1759
    %v1764 = vsub.f32 %v1746, %v1760
    %v1765 = vsub.f32 %v1747, %v1761
    %v1766 = vsub.f32 %v1748, %v1762
    %v1767 = vmul.f32 %v1763, %v1763
    %v1768 = vmul.f32 %v1764, %v1764
    %v1769 = vmul.f32 %v1765, %v1765
    %v1770 = vmul.f32 %v1766, %v1766
    %1771 = vadd.xlane.f32.xlu0 %v1767
    %v1772 = vpop.xlane.xlu0 %1771
    %1773 = vadd.xlane.f32.xlu0 %v1768
    %v1774 = vpop.xlane.xlu0 %1773
    %1775 = vadd.xlane.f32.xlu0 %v1769
    %v1776 = vpop.xlane.xlu0 %1775
    %1777 = vadd.xlane.f32.xlu0 %v1770
    %v1778 = vpop.xlane.xlu0 %1777
    %v1779 = vmul.f32 %v1772, %v1334
    %v1780 = vmul.f32 %v1774, %v1334
    %v1781 = vmul.f32 %v1776, %v1334
    %v1782 = vmul.f32 %v1778, %v1334
    %v1783 = vadd.f32 %v1779, 1e-05
    %v1784 = vadd.f32 %v1780, 1e-05
    %v1785 = vadd.f32 %v1781, 1e-05
    %v1786 = vadd.f32 %v1782, 1e-05
    %v1787 = vrsqrt.pop %v1783
    %v1788 = vmul.f32 %v1787, %v1783
    %v1789 = vmul.f32 %v1788, %v1787
    %v1790 = vmul.f32 0.5, %v1789
    %v1791 = vsub.f32 1.5, %v1790
    %v1792 = vmul.f32 %v1787, %v1791
    %vm1793 = vweird.f32 %v1783
    %vm1794 = vweird.f32 %v1787
    %vm1795 = vmor %vm1793, %vm1794
    %v1796 = vsel %vm1795, %v1787, %v1792
    %v1797 = vrsqrt.pop %v1784
    %v1798 = vmul.f32 %v1797, %v1784
    %v1799 = vmul.f32 %v1798, %v1797
    %v1800 = vmul.f32 0.5, %v1799
    %v1801 = vsub.f32 1.5, %v1800
    %v1802 = vmul.f32 %v1797, %v1801
    %vm1803 = vweird.f32 %v1784
    %vm1804 = vweird.f32 %v1797
    %vm1805 = vmor %vm1803, %vm1804
    %v1806 = vsel %vm1805, %v1797, %v1802
    %v1807 = vrsqrt.pop %v1785
    %v1808 = vmul.f32 %v1807, %v1785
    %v1809 = vmul.f32 %v1808, %v1807
    %v1810 = vmul.f32 0.5, %v1809
    %v1811 = vsub.f32 1.5, %v1810
    %v1812 = vmul.f32 %v1807, %v1811
    %vm1813 = vweird.f32 %v1785
    %vm1814 = vweird.f32 %v1807
    %vm1815 = vmor %vm1813, %vm1814
    %v1816 = vsel %vm1815, %v1807, %v1812
    %v1817 = vrsqrt.pop %v1786
    %v1818 = vmul.f32 %v1817, %v1786
    %v1819 = vmul.f32 %v1818, %v1817
    %v1820 = vmul.f32 0.5, %v1819
    %v1821 = vsub.f32 1.5, %v1820
    %v1822 = vmul.f32 %v1817, %v1821
    %vm1823 = vweird.f32 %v1786
    %vm1824 = vweird.f32 %v1817
    %vm1825 = vmor %vm1823, %vm1824
    %v1826 = vsel %vm1825, %v1817, %v1822
    %v1827 = vmul.f32 %v1763, %v1796
    %v1828 = vmul.f32 %v1764, %v1806
    %v1829 = vmul.f32 %v1765, %v1816
    %v1830 = vmul.f32 %v1766, %v1826
    %v1832 = vperm.slane %v1749, 0
    %v1834 = vmul.f32 %v1827, %v1832
    %v1835 = vmul.f32 %v1828, %v1832
    %v1836 = vmul.f32 %v1829, %v1832
    %v1837 = vmul.f32 %v1830, %v1832
    %v1839 = vperm.slane %v1750, 0
    %v1841 = vadd.f32 %v1834, %v1839
    %v1842 = vadd.f32 %v1835, %v1839
    %v1843 = vadd.f32 %v1836, %v1839
    %v1844 = vadd.f32 %v1837, %v1839
    %1845 = vst [vmem:[%s13] sm:$0xff] %v1841
    %1846 = vst [vmem:[%s13 + $0x8] sm:$0xff] %v1842
    %1847 = vst [vmem:[%s13 + $0x10] sm:$0xff] %v1843
    %1848 = vst [vmem:[%s13 + $0x18] sm:$0xff] %v1844
    // Predicated region
    $region66: #{transformer_block_forward.1} parent=1 // pred_check
      _
    $region67: #{transformer_block_forward.1} parent=1 // pred_check_branch
      %1850 = sbr.rel (0) target = $region69
    $region68: #{transformer_block_forward.1} parent=1 // pred_region
      _
    $region69: #{transformer_block_forward.1} parent=1 // pred_fallthru
      _
    // Predicated region
    $region70: #{transformer_block_forward.1} parent=1 // pred_check
      _
    $region71: #{transformer_block_forward.1} parent=1 // pred_check_branch
      %1852 = sbr.rel (0) target = $region73
    $region72: #{transformer_block_forward.1} parent=1 // pred_region
      _
    $region73: #{transformer_block_forward.1} parent=1 // pred_fallthru
      _
    %1853 = vsyncpa [#allocation3], 1
    %1854 = vsyncpa [#allocation5], 1

</llo_original>
